<compile_context>
chip_gen: v5e
topology: v5e:2x2
jax: 0.10.0
libtpu: 0.0.40
codegen_flags: <defaults>
</compile_context>

<pallas_src>
import jax
import jax.numpy as jnp
from jax.experimental import pallas as pl
from jax.experimental.pallas import tpu as pltpu


def _mlp_kernel(x_ref, w1_ref, b1_ref, w2_ref, b2_ref, w3_ref, b3_ref, o_ref):
    # x: (TB, Fp) bf16 | w1: (Fp, H1p) bf16 | b1: (1, H1p) f32
    # w2: (H1p, H2p) bf16 | b2: (1, H2p) f32 | w3: (1, H2p) f32 | b3: (1, 1) f32
    x = x_ref[...]
    h1 = jnp.dot(x, w1_ref[...], preferred_element_type=jnp.float32)     # MXU, f32 acc
    h1 = jnp.maximum(h1 + b1_ref[...], 0.0)                              # f32 epilogue
    h2 = jnp.dot(h1.astype(jnp.bfloat16), w2_ref[...],
                 preferred_element_type=jnp.float32)                     # MXU, f32 acc
    h2 = jnp.maximum(h2 + b2_ref[...], 0.0)                              # f32 epilogue
    # Final (H2 -> 1) layer as elementwise mul + XLU lane reduction (no N=1 matmul).
    z = jnp.sum(h2 * w3_ref[...], axis=-1, keepdims=True) + b3_ref[...]  # (TB, 1)
    o_ref[...] = jax.nn.sigmoid(z)                                       # EUP


def _round_up(n, m):
    return ((n + m - 1) // m) * m


def baseline_mlp_forward(x, w1, b1, w2, b2, w3, b3):
    """x: (B, F) f32.  Weights stored transposed vs PyTorch: w has shape (in, out)."""
    B, F = x.shape
    H1 = w1.shape[1]
    H2 = w2.shape[1]
    Fp, H1p, H2p = _round_up(F, 128), _round_up(H1, 128), _round_up(H2, 128)
    # Batch tile: sublane-aligned, grown up to 512 rows to amortize grid overhead.
    TB = min(512, _round_up(B, 8))
    Bp = _round_up(B, TB)
    n_tiles = Bp // TB

    # Zero-pad once at the wrapper level to lane-aligned shapes; cast matmul
    # operands to bf16 (biases / w3-row / epilogue stay f32).
    xp = jnp.zeros((Bp, Fp), jnp.bfloat16).at[:B, :F].set(x.astype(jnp.bfloat16))
    w1p = jnp.zeros((Fp, H1p), jnp.bfloat16).at[:F, :H1].set(w1.astype(jnp.bfloat16))
    b1p = jnp.zeros((1, H1p), jnp.float32).at[:, :H1].set(b1.reshape(1, H1))
    w2p = jnp.zeros((H1p, H2p), jnp.bfloat16).at[:H1, :H2].set(w2.astype(jnp.bfloat16))
    b2p = jnp.zeros((1, H2p), jnp.float32).at[:, :H2].set(b2.reshape(1, H2))
    w3p = jnp.zeros((1, H2p), jnp.float32).at[:, :H2].set(w3.reshape(1, H2))
    b3p = b3.reshape(1, 1).astype(jnp.float32)

    flops = 2 * Bp * (Fp * H1p + H1p * H2p + H2p)
    bytes_accessed = (xp.size * 2 + w1p.size * 2 + w2p.size * 2
                      + (b1p.size + b2p.size + w3p.size + b3p.size) * 4 + Bp * 4)

    out = pl.pallas_call(
        _mlp_kernel,
        out_shape=jax.ShapeDtypeStruct((Bp, 1), jnp.float32),
        grid=(n_tiles,),
        in_specs=[
            pl.BlockSpec((TB, Fp), lambda i: (i, 0)),      # x: tiled over batch
            pl.BlockSpec((Fp, H1p), lambda i: (0, 0)),     # weights: VMEM-resident
            pl.BlockSpec((1, H1p), lambda i: (0, 0)),
            pl.BlockSpec((H1p, H2p), lambda i: (0, 0)),
            pl.BlockSpec((1, H2p), lambda i: (0, 0)),
            pl.BlockSpec((1, H2p), lambda i: (0, 0)),
            pl.BlockSpec((1, 1), lambda i: (0, 0)),
        ],
        out_specs=pl.BlockSpec((TB, 1), lambda i: (i, 0)),
        compiler_params=pltpu.CompilerParams(
            dimension_semantics=("parallel",),
            vmem_limit_bytes=16 << 20,
        ),
        cost_estimate=pl.CostEstimate(
            flops=flops, transcendentals=Bp, bytes_accessed=bytes_accessed),
    )(xp, w1p, b1p, w2p, b2p, w3p, b3p)
    return out[:B]


def init_params(key, in_features=170):
    # Deterministic PyTorch-style uniform(-1/sqrt(fan_in), 1/sqrt(fan_in)) init.
    dims = [(in_features, 4 * in_features),
            (4 * in_features, 2 * in_features),
            (2 * in_features, 1)]
    params = []
    for (fan_in, fan_out) in dims:
        key, kw, kb = jax.random.split(key, 3)
        bound = 1.0 / jnp.sqrt(float(fan_in))
        w = jax.random.uniform(kw, (fan_in, fan_out), jnp.float32, -bound, bound)
        b = jax.random.uniform(kb, (1, fan_out), jnp.float32, -bound, bound)
        params += [w, b]
    return params


if __name__ == "__main__":
    in_features = 170
    batch = 8
    key = jax.random.PRNGKey(0)
    kx, kp = jax.random.split(key)
    x = jax.random.normal(kx, (batch, in_features), dtype=jnp.float32)
    w1, b1, w2, b2, w3, b3 = init_params(kp, in_features)

    out = baseline_mlp_forward(x, w1, b1, w2, b2, w3, b3)
    out = jax.block_until_ready(out)
    assert out.shape == (batch, 1)

    # bf16-matched reference (same input quantization as the kernel matmuls).
    xb = x.astype(jnp.bfloat16).astype(jnp.float32)
    w1b = w1.astype(jnp.bfloat16).astype(jnp.float32)
    w2b = w2.astype(jnp.bfloat16).astype(jnp.float32)
    h1 = jnp.maximum(xb @ w1b + b1, 0.0)
    h2 = jnp.maximum(h1.astype(jnp.bfloat16).astype(jnp.float32) @ w2b + b2, 0.0)
    ref_bf16 = jax.nn.sigmoid(h2 @ w3.reshape(-1, 1) + b3)
    assert jnp.allclose(out, ref_bf16, atol=1e-3, rtol=1e-3)

    # Full-f32 semantic reference (loose tolerance due to bf16 matmul inputs).
    h1f = jnp.maximum(x @ w1 + b1, 0.0)
    h2f = jnp.maximum(h1f @ w2 + b2, 0.0)
    ref_f32 = jax.nn.sigmoid(h2f @ w3 + b3)
    assert jnp.allclose(out, ref_f32, atol=2e-2, rtol=2e-2)

    print("KERNEL_OK")
</pallas_src>

<mosaic_0001>
module attributes {stable_mosaic.version = 11 : i64} {
  func.func @_mlp_kernel(%arg0: i32, %arg1: memref<8x256xbf16, #tpu.memory_space<vmem>>, %arg2: memref<256x768xbf16, #tpu.memory_space<vmem>>, %arg3: memref<1x768xf32, #tpu.memory_space<vmem>>, %arg4: memref<768x384xbf16, #tpu.memory_space<vmem>>, %arg5: memref<1x384xf32, #tpu.memory_space<vmem>>, %arg6: memref<1x384xf32, #tpu.memory_space<vmem>>, %arg7: memref<1x1xf32, #tpu.memory_space<vmem>>, %arg8: memref<8x1xf32, #tpu.memory_space<vmem>>) attributes {dimension_semantics = [#tpu.dimension_semantics<parallel>], iteration_bounds = array<i64: 1>, scalar_prefetch = 0 : i64, scratch_operands = 0 : i64, tpu.core_type = #tpu.core_type<tc>, window_params = [{transform_indices = @transform_0, window_bounds = array<i64: 8, 256>}, {pipeline_mode = #tpu.pipeline_mode<synchronous>, transform_indices = @transform_1, window_bounds = array<i64: 256, 768>}, {pipeline_mode = #tpu.pipeline_mode<synchronous>, transform_indices = @transform_2, window_bounds = array<i64: 1, 768>}, {pipeline_mode = #tpu.pipeline_mode<synchronous>, transform_indices = @transform_3, window_bounds = array<i64: 768, 384>}, {pipeline_mode = #tpu.pipeline_mode<synchronous>, transform_indices = @transform_4, window_bounds = array<i64: 1, 384>}, {pipeline_mode = #tpu.pipeline_mode<synchronous>, transform_indices = @transform_5, window_bounds = array<i64: 1, 384>}, {pipeline_mode = #tpu.pipeline_mode<synchronous>, transform_indices = @transform_6, window_bounds = array<i64: 1, 1>}, {transform_indices = @transform_7, window_bounds = array<i64: 8, 1>}]} {
    %c0 = arith.constant 0 : index
    %c0_0 = arith.constant 0 : index
    %0 = vector.load %arg1[%c0, %c0_0] : memref<8x256xbf16, #tpu.memory_space<vmem>>, vector<8x256xbf16>
    %c0_1 = arith.constant 0 : index
    %c0_2 = arith.constant 0 : index
    %1 = vector.load %arg2[%c0_1, %c0_2] : memref<256x768xbf16, #tpu.memory_space<vmem>>, vector<256x768xbf16>
    %cst = arith.constant dense<0.000000e+00> : vector<8x768xf32>
    %2 = tpu.matmul %0, %1, %cst {dimension_numbers = #tpu.dot_dimension_numbers<[1], [0], [0], [1], [0, 0, 1, 1], [], []>} : vector<8x256xbf16>, vector<256x768xbf16>, vector<8x768xf32> -> vector<8x768xf32>
    %c0_3 = arith.constant 0 : index
    %c0_4 = arith.constant 0 : index
    %3 = vector.load %arg3[%c0_3, %c0_4] : memref<1x768xf32, #tpu.memory_space<vmem>>, vector<1x768xf32>
    %4 = vector.broadcast %3 : vector<1x768xf32> to vector<8x768xf32>
    %5 = arith.addf %2, %4 : vector<8x768xf32>
    %cst_5 = arith.constant 0.000000e+00 : f32
    %6 = vector.broadcast %cst_5 : f32 to vector<8x768xf32>
    %7 = arith.maximumf %5, %6 : vector<8x768xf32>
    %8 = arith.truncf %7 : vector<8x768xf32> to vector<8x768xbf16>
    %c0_6 = arith.constant 0 : index
    %c0_7 = arith.constant 0 : index
    %9 = vector.load %arg4[%c0_6, %c0_7] : memref<768x384xbf16, #tpu.memory_space<vmem>>, vector<768x384xbf16>
    %cst_8 = arith.constant dense<0.000000e+00> : vector<8x384xf32>
    %10 = tpu.matmul %8, %9, %cst_8 {dimension_numbers = #tpu.dot_dimension_numbers<[1], [0], [0], [1], [0, 0, 1, 1], [], []>} : vector<8x768xbf16>, vector<768x384xbf16>, vector<8x384xf32> -> vector<8x384xf32>
    %c0_9 = arith.constant 0 : index
    %c0_10 = arith.constant 0 : index
    %11 = vector.load %arg5[%c0_9, %c0_10] : memref<1x384xf32, #tpu.memory_space<vmem>>, vector<1x384xf32>
    %12 = vector.broadcast %11 : vector<1x384xf32> to vector<8x384xf32>
    %13 = arith.addf %10, %12 : vector<8x384xf32>
    %cst_11 = arith.constant 0.000000e+00 : f32
    %14 = vector.broadcast %cst_11 : f32 to vector<8x384xf32>
    %15 = arith.maximumf %13, %14 : vector<8x384xf32>
    %c0_12 = arith.constant 0 : index
    %c0_13 = arith.constant 0 : index
    %16 = vector.load %arg6[%c0_12, %c0_13] : memref<1x384xf32, #tpu.memory_space<vmem>>, vector<1x384xf32>
    %17 = vector.broadcast %16 : vector<1x384xf32> to vector<8x384xf32>
    %18 = arith.mulf %15, %17 : vector<8x384xf32>
    %cst_14 = arith.constant dense<0.000000e+00> : vector<8xf32>
    %19 = vector.multi_reduction <add>, %18, %cst_14 [1] : vector<8x384xf32> to vector<8xf32>
    %20 = vector.shape_cast %19 : vector<8xf32> to vector<8x1xf32>
    %c0_15 = arith.constant 0 : index
    %c0_16 = arith.constant 0 : index
    %21 = vector.load %arg7[%c0_15, %c0_16] : memref<1x1xf32, #tpu.memory_space<vmem>>, vector<1x1xf32>
    %22 = vector.broadcast %21 : vector<1x1xf32> to vector<8x1xf32>
    %23 = arith.addf %20, %22 : vector<8x1xf32>
    %24 = arith.negf %23 : vector<8x1xf32>
    %25 = math.exp %24 : vector<8x1xf32>
    %cst_17 = arith.constant 1.000000e+00 : f32
    %26 = vector.broadcast %cst_17 : f32 to vector<8x1xf32>
    %27 = arith.addf %26, %25 : vector<8x1xf32>
    %28 = arith.divf %26, %27 : vector<8x1xf32>
    %c0_18 = arith.constant 0 : index
    %c0_19 = arith.constant 0 : index
    %29 = vector.load %arg8[%c0_18, %c0_19] : memref<8x1xf32, #tpu.memory_space<vmem>>, vector<8x1xf32>
    tpu.vector_store %arg8[%c0_18, %c0_19], %28 {strides = array<i32>} : memref<8x1xf32, #tpu.memory_space<vmem>>, vector<8x1xf32>,
    return
  }
  func.func @transform_0(%arg0: i32) -> (i32, i32) {
    %c0_i32 = arith.constant 0 : i32
    %c0_i32_0 = arith.constant 0 : i32
    return %arg0, %c0_i32 : i32, i32
  }
  func.func @transform_1(%arg0: i32) -> (i32, i32) {
    %c0_i32 = arith.constant 0 : i32
    %c0_i32_0 = arith.constant 0 : i32
    %c0_i32_1 = arith.constant 0 : i32
    return %c0_i32, %c0_i32_0 : i32, i32
  }
  func.func @transform_2(%arg0: i32) -> (i32, i32) {
    %c0_i32 = arith.constant 0 : i32
    %c0_i32_0 = arith.constant 0 : i32
    %c0_i32_1 = arith.constant 0 : i32
    return %c0_i32, %c0_i32_0 : i32, i32
  }
  func.func @transform_3(%arg0: i32) -> (i32, i32) {
    %c0_i32 = arith.constant 0 : i32
    %c0_i32_0 = arith.constant 0 : i32
    %c0_i32_1 = arith.constant 0 : i32
    return %c0_i32, %c0_i32_0 : i32, i32
  }
  func.func @transform_4(%arg0: i32) -> (i32, i32) {
    %c0_i32 = arith.constant 0 : i32
    %c0_i32_0 = arith.constant 0 : i32
    %c0_i32_1 = arith.constant 0 : i32
    return %c0_i32, %c0_i32_0 : i32, i32
  }
  func.func @transform_5(%arg0: i32) -> (i32, i32) {
    %c0_i32 = arith.constant 0 : i32
    %c0_i32_0 = arith.constant 0 : i32
    %c0_i32_1 = arith.constant 0 : i32
    return %c0_i32, %c0_i32_0 : i32, i32
  }
  func.func @transform_6(%arg0: i32) -> (i32, i32) {
    %c0_i32 = arith.constant 0 : i32
    %c0_i32_0 = arith.constant 0 : i32
    %c0_i32_1 = arith.constant 0 : i32
    return %c0_i32, %c0_i32_0 : i32, i32
  }
  func.func @transform_7(%arg0: i32) -> (i32, i32) {
    %c0_i32 = arith.constant 0 : i32
    %c0_i32_0 = arith.constant 0 : i32
    return %arg0, %c0_i32 : i32, i32
  }
}

</mosaic_0001>

<llo_original>
// kernel: tpu_custom_call.1
$region0: #{tpu_custom_call.1}
  #allocation0 [shape = 'u32[]', space=smem, size = 0x4, offset = 0x4, fixed_abs, tag = 'smem constant byte address 0x4 - core index']
  #allocation1 [shape = 'u32[72,128]{1,0:T(1,128)}', space=vmem, size = 0x9000, scoped, tag = 'internal scratch']
  #allocation2 [shape = 'f32[1,1]{1,0:T(1,128)S(1)}', space=vmem, size = 0x200, scoped, tag = 'scoped memory for tpu_custom_call.1']
  %s0 = inlined_call_operand.hbm [shape: bf16[8,256], index: 0, kind: input, shape index: {}]
  %s1 = inlined_call_operand.hbm [shape: bf16[256,768], index: 1, kind: input, shape index: {}]
  %s2 = inlined_call_operand.hbm [shape: f32[1,768], index: 2, kind: input, shape index: {}]
  %s3 = inlined_call_operand.hbm [shape: bf16[768,384], index: 3, kind: input, shape index: {}]
  %s4 = inlined_call_operand.vmem [shape: f32[1,384], index: 4, kind: input, shape index: {}]
  %s5 = inlined_call_operand.vmem [shape: f32[1,384], index: 5, kind: input, shape index: {}]
  %s6 = inlined_call_operand.<no memory space> [shape: f32[1,1], index: 6, kind: input, shape index: {}]
  %s7 = inlined_call_operand.vmem [shape: f32[8,1], index: 7, kind: output, shape index: {}]
  %s8 = sld [smem:[#allocation0]]
  $region54: #{tpu_custom_call.1} parent=0
    _
  %s10 = ssub.s32 1, %s8
  %s11 = scalar_select 0, %s10, %s8
  %v12 = vstv %s6
  %13 = vst [vmem:[#allocation2] sm:$0x1] %v12
  $region1: #{tpu_custom_call.1} parent=0
    #allocation3 [shape = 'u8[4096]{0}', space=vmem, size = 0x1000, scoped, tag = 'input window, operand 0, single buffered']
    #allocation4 [shape = 's32[1]{0}', space=sflag, size = 0x4, scoped, tag = 'scoped memory for tpu_custom_call.1']
    #allocation5 [shape = 'u8[393216]{0}', space=vmem, size = 0x60000, scoped, tag = 'input window, operand 1, single buffered']
    #allocation6 [shape = 's32[1]{0}', space=sflag, size = 0x4, scoped, tag = 'scoped memory for tpu_custom_call.1']
    #allocation7 [shape = 'u8[3072]{0}', space=vmem, size = 0xc00, scoped, tag = 'input window, operand 2, single buffered']
    #allocation8 [shape = 'u8[589824]{0}', space=vmem, size = 0x90000, scoped, tag = 'input window, operand 3, single buffered']
    #allocation9 [shape = 's32[1]{0}', space=sflag, size = 0x4, scoped, tag = 'scoped memory for tpu_custom_call.1']
    %14 = vsyncpa [#allocation4], 0
    %15 = vsyncpa [#allocation6], 0
    %16 = vsyncpa [#allocation9], 0
    // Predicated region
    $region2: #{tpu_custom_call.1} parent=1 // pred_check
      _
    $region3: #{tpu_custom_call.1} parent=1 // pred_check_branch
      %18 = sbr.rel (0) target = $region5
    $region4: #{tpu_custom_call.1} parent=1 // pred_region
      %20 = vsyncadd [#allocation4], 0
      %s22 = sshll.u32 %s0, 4
      %s23 = int_to_ptr.hbm [resolvable:$true] %s22
      %s24 = sshll.u32 [#allocation3], 4
      %s25 = int_to_ptr.vmem [resolvable:$true] %s24
      %27 = dma.hbm_to_vmem [thread:$0]  %s23, 128, %s25, [#allocation4]
    $region5: #{tpu_custom_call.1} parent=1 // pred_fallthru
      _
    // Predicated region
    $region6: #{tpu_custom_call.1} parent=1 // pred_check
      _
    $region7: #{tpu_custom_call.1} parent=1 // pred_check_branch
      %29 = sbr.rel (0) target = $region9
    $region8: #{tpu_custom_call.1} parent=1 // pred_region
      %31 = vsyncadd [#allocation6], 0
      %s32 = sshll.u32 %s1, 4
      %s33 = int_to_ptr.hbm [resolvable:$true] %s32
      %s34 = sshll.u32 [#allocation5], 4
      %s35 = int_to_ptr.vmem [resolvable:$true] %s34
      %40 = dma.hbm_to_vmem [thread:$0]  %s33, 12288, %s35, [#allocation6], 384, 384, 24
    $region9: #{tpu_custom_call.1} parent=1 // pred_fallthru
      _
    // Predicated region
    $region10: #{tpu_custom_call.1} parent=1 // pred_check
      _
    $region11: #{tpu_custom_call.1} parent=1 // pred_check_branch
      %42 = sbr.rel (0) target = $region13
    $region12: #{tpu_custom_call.1} parent=1 // pred_region
      %44 = vsyncadd [#allocation6], 0
      %s46 = sshll.u32 %s2, 4
      %s47 = int_to_ptr.hbm [resolvable:$true] %s46
      %s48 = sshll.u32 [#allocation7], 4
      %s49 = int_to_ptr.vmem [resolvable:$true] %s48
      %51 = dma.hbm_to_vmem [thread:$0]  %s47, 96, %s49, [#allocation6]
    $region13: #{tpu_custom_call.1} parent=1 // pred_fallthru
      _
    // Predicated region
    $region14: #{tpu_custom_call.1} parent=1 // pred_check
      _
    $region15: #{tpu_custom_call.1} parent=1 // pred_check_branch
      %53 = sbr.rel (0) target = $region17
    $region16: #{tpu_custom_call.1} parent=1 // pred_region
      %55 = vsyncadd [#allocation9], 0
      %s56 = sshll.u32 %s3, 4
      %s57 = int_to_ptr.hbm [resolvable:$true] %s56
      %s58 = sshll.u32 [#allocation8], 4
      %s59 = int_to_ptr.vmem [resolvable:$true] %s58
      %64 = dma.hbm_to_vmem [thread:$0]  %s57, 18432, %s59, [#allocation9], 192, 192, 12
    $region17: #{tpu_custom_call.1} parent=1 // pred_fallthru
      _
    // Predicated region
    $region18: #{tpu_custom_call.1} parent=1 // pred_check
      _
    $region19: #{tpu_custom_call.1} parent=1 // pred_check_branch
      %66 = sbr.rel (0) target = $region21
    $region20: #{tpu_custom_call.1} parent=1 // pred_region
      _
    $region21: #{tpu_custom_call.1} parent=1 // pred_fallthru
      _
    // Predicated region
    $region22: #{tpu_custom_call.1} parent=1 // pred_check
      _
    $region23: #{tpu_custom_call.1} parent=1 // pred_check_branch
      %68 = sbr.rel (0) target = $region25
    $region24: #{tpu_custom_call.1} parent=1 // pred_region
      _
    $region25: #{tpu_custom_call.1} parent=1 // pred_fallthru
      _
    // Predicated region
    $region26: #{tpu_custom_call.1} parent=1 // pred_check
      _
    $region27: #{tpu_custom_call.1} parent=1 // pred_check_branch
      %70 = sbr.rel (0) target = $region29
    $region28: #{tpu_custom_call.1} parent=1 // pred_region
      _
    $region29: #{tpu_custom_call.1} parent=1 // pred_fallthru
      _
    // Predicated region
    $region30: #{tpu_custom_call.1} parent=1 // pred_check
      _
    $region31: #{tpu_custom_call.1} parent=1 // pred_check_branch
      %72 = sbr.rel (0) target = $region33
    $region32: #{tpu_custom_call.1} parent=1 // pred_region
      %74 = dma.done [#allocation4], 128
    $region33: #{tpu_custom_call.1} parent=1 // pred_fallthru
      _
    // Predicated region
    $region34: #{tpu_custom_call.1} parent=1 // pred_check
      _
    $region35: #{tpu_custom_call.1} parent=1 // pred_check_branch
      %76 = sbr.rel (0) target = $region37
    $region36: #{tpu_custom_call.1} parent=1 // pred_region
      %78 = dma.done [#allocation6], 12288
    $region37: #{tpu_custom_call.1} parent=1 // pred_fallthru
      _
    // Predicated region
    $region38: #{tpu_custom_call.1} parent=1 // pred_check
      _
    $region39: #{tpu_custom_call.1} parent=1 // pred_check_branch
      %80 = sbr.rel (0) target = $region41
    $region40: #{tpu_custom_call.1} parent=1 // pred_region
      %82 = dma.done [#allocation6], 96
    $region41: #{tpu_custom_call.1} parent=1 // pred_fallthru
      _
    // Predicated region
    $region42: #{tpu_custom_call.1} parent=1 // pred_check
      _
    $region43: #{tpu_custom_call.1} parent=1 // pred_check_branch
      %84 = sbr.rel (0) target = $region45
    $region44: #{tpu_custom_call.1} parent=1 // pred_region
      %86 = dma.done [#allocation9], 18432
    $region45: #{tpu_custom_call.1} parent=1 // pred_fallthru
      _
    %v87 = vld [vmem:[#allocation3] sm:$0xff]
    %v88 = vld [vmem:[#allocation5] sm:$0xff]
    %v89 = vld [vmem:[#allocation5 + $0x8] sm:$0xff]
    %v90 = vld [vmem:[#allocation5 + $0x10] sm:$0xff]
    %v91 = vld [vmem:[#allocation5 + $0x18] sm:$0xff]
    %v92 = vld [vmem:[#allocation5 + $0x20] sm:$0xff]
    %v93 = vld [vmem:[#allocation5 + $0x28] sm:$0xff]
    %v94 = vld [vmem:[#allocation5 + $0x30] sm:$0xff]
    %v95 = vld [vmem:[#allocation5 + $0x38] sm:$0xff]
    %v96 = vld [vmem:[#allocation5 + $0x40] sm:$0xff]
    %v97 = vld [vmem:[#allocation5 + $0x48] sm:$0xff]
    %v98 = vld [vmem:[#allocation5 + $0x50] sm:$0xff]
    %v99 = vld [vmem:[#allocation5 + $0x58] sm:$0xff]
    %v100 = vld [vmem:[#allocation5 + $0x60] sm:$0xff]
    %v101 = vld [vmem:[#allocation5 + $0x68] sm:$0xff]
    %v102 = vld [vmem:[#allocation5 + $0x70] sm:$0xff]
    %v103 = vld [vmem:[#allocation5 + $0x78] sm:$0xff]
    %v104 = vld [vmem:[#allocation5 + $0x80] sm:$0xff]
    %v105 = vld [vmem:[#allocation5 + $0x88] sm:$0xff]
    %v106 = vld [vmem:[#allocation5 + $0x90] sm:$0xff]
    %v107 = vld [vmem:[#allocation5 + $0x98] sm:$0xff]
    %v108 = vld [vmem:[#allocation5 + $0xa0] sm:$0xff]
    %v109 = vld [vmem:[#allocation5 + $0xa8] sm:$0xff]
    %v110 = vld [vmem:[#allocation5 + $0xb0] sm:$0xff]
    %v111 = vld [vmem:[#allocation5 + $0xb8] sm:$0xff]
    %v112 = vld [vmem:[#allocation5 + $0xc0] sm:$0xff]
    %v113 = vld [vmem:[#allocation5 + $0xc8] sm:$0xff]
    %v114 = vld [vmem:[#allocation5 + $0xd0] sm:$0xff]
    %v115 = vld [vmem:[#allocation5 + $0xd8] sm:$0xff]
    %v116 = vld [vmem:[#allocation5 + $0xe0] sm:$0xff]
    %v117 = vld [vmem:[#allocation5 + $0xe8] sm:$0xff]
    %v118 = vld [vmem:[#allocation5 + $0xf0] sm:$0xff]
    %v119 = vld [vmem:[#allocation5 + $0xf8] sm:$0xff]
    %v120 = vld [vmem:[#allocation5 + $0x100] sm:$0xff]
    %v121 = vld [vmem:[#allocation5 + $0x108] sm:$0xff]
    %v122 = vld [vmem:[#allocation5 + $0x110] sm:$0xff]
    %v123 = vld [vmem:[#allocation5 + $0x118] sm:$0xff]
    %v124 = vld [vmem:[#allocation5 + $0x120] sm:$0xff]
    %v125 = vld [vmem:[#allocation5 + $0x128] sm:$0xff]
    %v126 = vld [vmem:[#allocation5 + $0x130] sm:$0xff]
    %v127 = vld [vmem:[#allocation5 + $0x138] sm:$0xff]
    %v128 = vld [vmem:[#allocation5 + $0x140] sm:$0xff]
    %v129 = vld [vmem:[#allocation5 + $0x148] sm:$0xff]
    %v130 = vld [vmem:[#allocation5 + $0x150] sm:$0xff]
    %v131 = vld [vmem:[#allocation5 + $0x158] sm:$0xff]
    %v132 = vld [vmem:[#allocation5 + $0x160] sm:$0xff]
    %v133 = vld [vmem:[#allocation5 + $0x168] sm:$0xff]
    %v134 = vld [vmem:[#allocation5 + $0x170] sm:$0xff]
    %v135 = vld [vmem:[#allocation5 + $0x178] sm:$0xff]
    %v136 = vld [vmem:[#allocation5 + $0x180] sm:$0xff]
    %v137 = vld [vmem:[#allocation5 + $0x188] sm:$0xff]
    %v138 = vld [vmem:[#allocation5 + $0x190] sm:$0xff]
    %v139 = vld [vmem:[#allocation5 + $0x198] sm:$0xff]
    %v140 = vld [vmem:[#allocation5 + $0x1a0] sm:$0xff]
    %v141 = vld [vmem:[#allocation5 + $0x1a8] sm:$0xff]
    %v142 = vld [vmem:[#allocation5 + $0x1b0] sm:$0xff]
    %v143 = vld [vmem:[#allocation5 + $0x1b8] sm:$0xff]
    %v144 = vld [vmem:[#allocation5 + $0x1c0] sm:$0xff]
    %v145 = vld [vmem:[#allocation5 + $0x1c8] sm:$0xff]
    %v146 = vld [vmem:[#allocation5 + $0x1d0] sm:$0xff]
    %v147 = vld [vmem:[#allocation5 + $0x1d8] sm:$0xff]
    %v148 = vld [vmem:[#allocation5 + $0x1e0] sm:$0xff]
    %v149 = vld [vmem:[#allocation5 + $0x1e8] sm:$0xff]
    %v150 = vld [vmem:[#allocation5 + $0x1f0] sm:$0xff]
    %v151 = vld [vmem:[#allocation5 + $0x1f8] sm:$0xff]
    %v152 = vld [vmem:[#allocation5 + $0x200] sm:$0xff]
    %v153 = vld [vmem:[#allocation5 + $0x208] sm:$0xff]
    %v154 = vld [vmem:[#allocation5 + $0x210] sm:$0xff]
    %v155 = vld [vmem:[#allocation5 + $0x218] sm:$0xff]
    %v156 = vld [vmem:[#allocation5 + $0x220] sm:$0xff]
    %v157 = vld [vmem:[#allocation5 + $0x228] sm:$0xff]
    %v158 = vld [vmem:[#allocation5 + $0x230] sm:$0xff]
    %v159 = vld [vmem:[#allocation5 + $0x238] sm:$0xff]
    %v160 = vld [vmem:[#allocation5 + $0x240] sm:$0xff]
    %v161 = vld [vmem:[#allocation5 + $0x248] sm:$0xff]
    %v162 = vld [vmem:[#allocation5 + $0x250] sm:$0xff]
    %v163 = vld [vmem:[#allocation5 + $0x258] sm:$0xff]
    %v164 = vld [vmem:[#allocation5 + $0x260] sm:$0xff]
    %v165 = vld [vmem:[#allocation5 + $0x268] sm:$0xff]
    %v166 = vld [vmem:[#allocation5 + $0x270] sm:$0xff]
    %v167 = vld [vmem:[#allocation5 + $0x278] sm:$0xff]
    %v168 = vld [vmem:[#allocation5 + $0x280] sm:$0xff]
    %v169 = vld [vmem:[#allocation5 + $0x288] sm:$0xff]
    %v170 = vld [vmem:[#allocation5 + $0x290] sm:$0xff]
    %v171 = vld [vmem:[#allocation5 + $0x298] sm:$0xff]
    %v172 = vld [vmem:[#allocation5 + $0x2a0] sm:$0xff]
    %v173 = vld [vmem:[#allocation5 + $0x2a8] sm:$0xff]
    %v174 = vld [vmem:[#allocation5 + $0x2b0] sm:$0xff]
    %v175 = vld [vmem:[#allocation5 + $0x2b8] sm:$0xff]
    %v176 = vld [vmem:[#allocation5 + $0x2c0] sm:$0xff]
    %v177 = vld [vmem:[#allocation5 + $0x2c8] sm:$0xff]
    %v178 = vld [vmem:[#allocation5 + $0x2d0] sm:$0xff]
    %v179 = vld [vmem:[#allocation5 + $0x2d8] sm:$0xff]
    %v180 = vld [vmem:[#allocation5 + $0x2e0] sm:$0xff]
    %v181 = vld [vmem:[#allocation5 + $0x2e8] sm:$0xff]
    %v182 = vld [vmem:[#allocation5 + $0x2f0] sm:$0xff]
    %v183 = vld [vmem:[#allocation5 + $0x2f8] sm:$0xff]
    %v184 = vld [vmem:[#allocation7] sm:$0x3f]
    %v186 = vperm.slane %v184, 0
    %v187 = vperm.slane %v184, 1
    %v188 = vperm.slane %v184, 2
    %v189 = vperm.slane %v184, 3
    %v190 = vperm.slane %v184, 4
    %v191 = vperm.slane %v184, 5
    %v199 = vunpack.c.l.b16 %v87
    %v200 = vunpack.c.h.b16 %v87
    %v201 = vpack.c.b16 %v199, %v199
    %v202 = vpack.c.b16 %v200, %v200
    %v301 = vunpack.c.l.b16 %v88
    %v302 = vunpack.c.h.b16 %v88
    %v303 = vunpack.c.l.b16 %v89
    %v304 = vunpack.c.h.b16 %v89
    %v305 = vunpack.c.l.b16 %v90
    %v306 = vunpack.c.h.b16 %v90
    %v307 = vunpack.c.l.b16 %v91
    %v308 = vunpack.c.h.b16 %v91
    %v309 = vunpack.c.l.b16 %v92
    %v310 = vunpack.c.h.b16 %v92
    %v311 = vunpack.c.l.b16 %v93
    %v312 = vunpack.c.h.b16 %v93
    %v313 = vunpack.c.l.b16 %v94
    %v314 = vunpack.c.h.b16 %v94
    %v315 = vunpack.c.l.b16 %v95
    %v316 = vunpack.c.h.b16 %v95
    %v317 = vunpack.c.l.b16 %v96
    %v318 = vunpack.c.h.b16 %v96
    %v319 = vunpack.c.l.b16 %v97
    %v320 = vunpack.c.h.b16 %v97
    %v321 = vunpack.c.l.b16 %v98
    %v322 = vunpack.c.h.b16 %v98
    %v323 = vunpack.c.l.b16 %v99
    %v324 = vunpack.c.h.b16 %v99
    %v325 = vunpack.c.l.b16 %v100
    %v326 = vunpack.c.h.b16 %v100
    %v327 = vunpack.c.l.b16 %v101
    %v328 = vunpack.c.h.b16 %v101
    %v329 = vunpack.c.l.b16 %v102
    %v330 = vunpack.c.h.b16 %v102
    %v331 = vunpack.c.l.b16 %v103
    %v332 = vunpack.c.h.b16 %v103
    %v333 = vunpack.c.l.b16 %v104
    %v334 = vunpack.c.h.b16 %v104
    %v335 = vunpack.c.l.b16 %v105
    %v336 = vunpack.c.h.b16 %v105
    %v337 = vunpack.c.l.b16 %v106
    %v338 = vunpack.c.h.b16 %v106
    %v339 = vunpack.c.l.b16 %v107
    %v340 = vunpack.c.h.b16 %v107
    %v341 = vunpack.c.l.b16 %v108
    %v342 = vunpack.c.h.b16 %v108
    %v343 = vunpack.c.l.b16 %v109
    %v344 = vunpack.c.h.b16 %v109
    %v345 = vunpack.c.l.b16 %v110
    %v346 = vunpack.c.h.b16 %v110
    %v347 = vunpack.c.l.b16 %v111
    %v348 = vunpack.c.h.b16 %v111
    %v349 = vunpack.c.l.b16 %v112
    %v350 = vunpack.c.h.b16 %v112
    %v351 = vunpack.c.l.b16 %v113
    %v352 = vunpack.c.h.b16 %v113
    %v353 = vunpack.c.l.b16 %v114
    %v354 = vunpack.c.h.b16 %v114
    %v355 = vunpack.c.l.b16 %v115
    %v356 = vunpack.c.h.b16 %v115
    %v357 = vunpack.c.l.b16 %v116
    %v358 = vunpack.c.h.b16 %v116
    %v359 = vunpack.c.l.b16 %v117
    %v360 = vunpack.c.h.b16 %v117
    %v361 = vunpack.c.l.b16 %v118
    %v362 = vunpack.c.h.b16 %v118
    %v363 = vunpack.c.l.b16 %v119
    %v364 = vunpack.c.h.b16 %v119
    %v365 = vunpack.c.l.b16 %v120
    %v366 = vunpack.c.h.b16 %v120
    %v367 = vunpack.c.l.b16 %v121
    %v368 = vunpack.c.h.b16 %v121
    %v369 = vunpack.c.l.b16 %v122
    %v370 = vunpack.c.h.b16 %v122
    %v371 = vunpack.c.l.b16 %v123
    %v372 = vunpack.c.h.b16 %v123
    %v373 = vunpack.c.l.b16 %v124
    %v374 = vunpack.c.h.b16 %v124
    %v375 = vunpack.c.l.b16 %v125
    %v376 = vunpack.c.h.b16 %v125
    %v377 = vunpack.c.l.b16 %v126
    %v378 = vunpack.c.h.b16 %v126
    %v379 = vunpack.c.l.b16 %v127
    %v380 = vunpack.c.h.b16 %v127
    %v381 = vunpack.c.l.b16 %v128
    %v382 = vunpack.c.h.b16 %v128
    %v383 = vunpack.c.l.b16 %v129
    %v384 = vunpack.c.h.b16 %v129
    %v385 = vunpack.c.l.b16 %v130
    %v386 = vunpack.c.h.b16 %v130
    %v387 = vunpack.c.l.b16 %v131
    %v388 = vunpack.c.h.b16 %v131
    %v389 = vunpack.c.l.b16 %v132
    %v390 = vunpack.c.h.b16 %v132
    %v391 = vunpack.c.l.b16 %v133
    %v392 = vunpack.c.h.b16 %v133
    %v393 = vunpack.c.l.b16 %v134
    %v394 = vunpack.c.h.b16 %v134
    %v395 = vunpack.c.l.b16 %v135
    %v396 = vunpack.c.h.b16 %v135
    %v397 = vunpack.c.l.b16 %v136
    %v398 = vunpack.c.h.b16 %v136
    %v399 = vunpack.c.l.b16 %v137
    %v400 = vunpack.c.h.b16 %v137
    %v401 = vunpack.c.l.b16 %v138
    %v402 = vunpack.c.h.b16 %v138
    %v403 = vunpack.c.l.b16 %v139
    %v404 = vunpack.c.h.b16 %v139
    %v405 = vunpack.c.l.b16 %v140
    %v406 = vunpack.c.h.b16 %v140
    %v407 = vunpack.c.l.b16 %v141
    %v408 = vunpack.c.h.b16 %v141
    %v409 = vunpack.c.l.b16 %v142
    %v410 = vunpack.c.h.b16 %v142
    %v411 = vunpack.c.l.b16 %v143
    %v412 = vunpack.c.h.b16 %v143
    %v413 = vunpack.c.l.b16 %v144
    %v414 = vunpack.c.h.b16 %v144
    %v415 = vunpack.c.l.b16 %v145
    %v416 = vunpack.c.h.b16 %v145
    %v417 = vunpack.c.l.b16 %v146
    %v418 = vunpack.c.h.b16 %v146
    %v419 = vunpack.c.l.b16 %v147
    %v420 = vunpack.c.h.b16 %v147
    %v421 = vunpack.c.l.b16 %v148
    %v422 = vunpack.c.h.b16 %v148
    %v423 = vunpack.c.l.b16 %v149
    %v424 = vunpack.c.h.b16 %v149
    %v425 = vunpack.c.l.b16 %v150
    %v426 = vunpack.c.h.b16 %v150
    %v427 = vunpack.c.l.b16 %v151
    %v428 = vunpack.c.h.b16 %v151
    %v429 = vunpack.c.l.b16 %v152
    %v430 = vunpack.c.h.b16 %v152
    %v431 = vunpack.c.l.b16 %v153
    %v432 = vunpack.c.h.b16 %v153
    %v433 = vunpack.c.l.b16 %v154
    %v434 = vunpack.c.h.b16 %v154
    %v435 = vunpack.c.l.b16 %v155
    %v436 = vunpack.c.h.b16 %v155
    %v437 = vunpack.c.l.b16 %v156
    %v438 = vunpack.c.h.b16 %v156
    %v439 = vunpack.c.l.b16 %v157
    %v440 = vunpack.c.h.b16 %v157
    %v441 = vunpack.c.l.b16 %v158
    %v442 = vunpack.c.h.b16 %v158
    %v443 = vunpack.c.l.b16 %v159
    %v444 = vunpack.c.h.b16 %v159
    %v445 = vunpack.c.l.b16 %v160
    %v446 = vunpack.c.h.b16 %v160
    %v447 = vunpack.c.l.b16 %v161
    %v448 = vunpack.c.h.b16 %v161
    %v449 = vunpack.c.l.b16 %v162
    %v450 = vunpack.c.h.b16 %v162
    %v451 = vunpack.c.l.b16 %v163
    %v452 = vunpack.c.h.b16 %v163
    %v453 = vunpack.c.l.b16 %v164
    %v454 = vunpack.c.h.b16 %v164
    %v455 = vunpack.c.l.b16 %v165
    %v456 = vunpack.c.h.b16 %v165
    %v457 = vunpack.c.l.b16 %v166
    %v458 = vunpack.c.h.b16 %v166
    %v459 = vunpack.c.l.b16 %v167
    %v460 = vunpack.c.h.b16 %v167
    %v461 = vunpack.c.l.b16 %v168
    %v462 = vunpack.c.h.b16 %v168
    %v463 = vunpack.c.l.b16 %v169
    %v464 = vunpack.c.h.b16 %v169
    %v465 = vunpack.c.l.b16 %v170
    %v466 = vunpack.c.h.b16 %v170
    %v467 = vunpack.c.l.b16 %v171
    %v468 = vunpack.c.h.b16 %v171
    %v469 = vunpack.c.l.b16 %v172
    %v470 = vunpack.c.h.b16 %v172
    %v471 = vunpack.c.l.b16 %v173
    %v472 = vunpack.c.h.b16 %v173
    %v473 = vunpack.c.l.b16 %v174
    %v474 = vunpack.c.h.b16 %v174
    %v475 = vunpack.c.l.b16 %v175
    %v476 = vunpack.c.h.b16 %v175
    %v477 = vunpack.c.l.b16 %v176
    %v478 = vunpack.c.h.b16 %v176
    %v479 = vunpack.c.l.b16 %v177
    %v480 = vunpack.c.h.b16 %v177
    %v481 = vunpack.c.l.b16 %v178
    %v482 = vunpack.c.h.b16 %v178
    %v483 = vunpack.c.l.b16 %v179
    %v484 = vunpack.c.h.b16 %v179
    %v485 = vunpack.c.l.b16 %v180
    %v486 = vunpack.c.h.b16 %v180
    %v487 = vunpack.c.l.b16 %v181
    %v488 = vunpack.c.h.b16 %v181
    %v489 = vunpack.c.l.b16 %v182
    %v490 = vunpack.c.h.b16 %v182
    %v491 = vunpack.c.l.b16 %v183
    %v492 = vunpack.c.h.b16 %v183
    %v493 = vpack.c.b16 %v307, %v301
    %v494 = vpack.c.b16 %v308, %v302
    %v495 = vpack.c.b16 %v309, %v303
    %v496 = vpack.c.b16 %v310, %v304
    %v497 = vpack.c.b16 %v311, %v305
    %v498 = vpack.c.b16 %v312, %v306
    %v499 = vpack.c.b16 %v319, %v313
    %v500 = vpack.c.b16 %v320, %v314
    %v501 = vpack.c.b16 %v321, %v315
    %v502 = vpack.c.b16 %v322, %v316
    %v503 = vpack.c.b16 %v323, %v317
    %v504 = vpack.c.b16 %v324, %v318
    %v505 = vpack.c.b16 %v331, %v325
    %v506 = vpack.c.b16 %v332, %v326
    %v507 = vpack.c.b16 %v333, %v327
    %v508 = vpack.c.b16 %v334, %v328
    %v509 = vpack.c.b16 %v335, %v329
    %v510 = vpack.c.b16 %v336, %v330
    %v511 = vpack.c.b16 %v343, %v337
    %v512 = vpack.c.b16 %v344, %v338
    %v513 = vpack.c.b16 %v345, %v339
    %v514 = vpack.c.b16 %v346, %v340
    %v515 = vpack.c.b16 %v347, %v341
    %v516 = vpack.c.b16 %v348, %v342
    %v517 = vpack.c.b16 %v355, %v349
    %v518 = vpack.c.b16 %v356, %v350
    %v519 = vpack.c.b16 %v357, %v351
    %v520 = vpack.c.b16 %v358, %v352
    %v521 = vpack.c.b16 %v359, %v353
    %v522 = vpack.c.b16 %v360, %v354
    %v523 = vpack.c.b16 %v367, %v361
    %v524 = vpack.c.b16 %v368, %v362
    %v525 = vpack.c.b16 %v369, %v363
    %v526 = vpack.c.b16 %v370, %v364
    %v527 = vpack.c.b16 %v371, %v365
    %v528 = vpack.c.b16 %v372, %v366
    %v529 = vpack.c.b16 %v379, %v373
    %v530 = vpack.c.b16 %v380, %v374
    %v531 = vpack.c.b16 %v381, %v375
    %v532 = vpack.c.b16 %v382, %v376
    %v533 = vpack.c.b16 %v383, %v377
    %v534 = vpack.c.b16 %v384, %v378
    %v535 = vpack.c.b16 %v391, %v385
    %v536 = vpack.c.b16 %v392, %v386
    %v537 = vpack.c.b16 %v393, %v387
    %v538 = vpack.c.b16 %v394, %v388
    %v539 = vpack.c.b16 %v395, %v389
    %v540 = vpack.c.b16 %v396, %v390
    %v541 = vpack.c.b16 %v403, %v397
    %v542 = vpack.c.b16 %v404, %v398
    %v543 = vpack.c.b16 %v405, %v399
    %v544 = vpack.c.b16 %v406, %v400
    %v545 = vpack.c.b16 %v407, %v401
    %v546 = vpack.c.b16 %v408, %v402
    %v547 = vpack.c.b16 %v415, %v409
    %v548 = vpack.c.b16 %v416, %v410
    %v549 = vpack.c.b16 %v417, %v411
    %v550 = vpack.c.b16 %v418, %v412
    %v551 = vpack.c.b16 %v419, %v413
    %v552 = vpack.c.b16 %v420, %v414
    %v553 = vpack.c.b16 %v427, %v421
    %v554 = vpack.c.b16 %v428, %v422
    %v555 = vpack.c.b16 %v429, %v423
    %v556 = vpack.c.b16 %v430, %v424
    %v557 = vpack.c.b16 %v431, %v425
    %v558 = vpack.c.b16 %v432, %v426
    %v559 = vpack.c.b16 %v439, %v433
    %v560 = vpack.c.b16 %v440, %v434
    %v561 = vpack.c.b16 %v441, %v435
    %v562 = vpack.c.b16 %v442, %v436
    %v563 = vpack.c.b16 %v443, %v437
    %v564 = vpack.c.b16 %v444, %v438
    %v565 = vpack.c.b16 %v451, %v445
    %v566 = vpack.c.b16 %v452, %v446
    %v567 = vpack.c.b16 %v453, %v447
    %v568 = vpack.c.b16 %v454, %v448
    %v569 = vpack.c.b16 %v455, %v449
    %v570 = vpack.c.b16 %v456, %v450
    %v571 = vpack.c.b16 %v463, %v457
    %v572 = vpack.c.b16 %v464, %v458
    %v573 = vpack.c.b16 %v465, %v459
    %v574 = vpack.c.b16 %v466, %v460
    %v575 = vpack.c.b16 %v467, %v461
    %v576 = vpack.c.b16 %v468, %v462
    %v577 = vpack.c.b16 %v475, %v469
    %v578 = vpack.c.b16 %v476, %v470
    %v579 = vpack.c.b16 %v477, %v471
    %v580 = vpack.c.b16 %v478, %v472
    %v581 = vpack.c.b16 %v479, %v473
    %v582 = vpack.c.b16 %v480, %v474
    %v583 = vpack.c.b16 %v487, %v481
    %v584 = vpack.c.b16 %v488, %v482
    %v585 = vpack.c.b16 %v489, %v483
    %v586 = vpack.c.b16 %v490, %v484
    %v587 = vpack.c.b16 %v491, %v485
    %v588 = vpack.c.b16 %v492, %v486
    %685 = vmatpush.bf16.msra.mxu0 %v535
    %686 = vmatpush.bf16.msra.mxu0 %v529
    %687 = vmatpush.bf16.msra.mxu0 %v523
    %688 = vmatpush.bf16.msra.mxu0 %v517
    %689 = vmatpush.bf16.msra.mxu0 %v511
    %690 = vmatpush.bf16.msra.mxu0 %v505
    %691 = vmatpush.bf16.msra.mxu0 %v499
    %692 = vmatpush.bf16.msra.mxu0 %v493
    %693 = vmatmul.bf16.gmra.mxu0 %v201
    %v694 = vpop.f32.mrf.mxu0
    %v695 = vadd.f32 %v186, %v694
    %v696 = vpop.f32.mrf.mxu0
    %697 = vdwg.mxu0
    %698 = vmatpush.bf16.msra.mxu0 %v583
    %699 = vmatpush.bf16.msra.mxu0 %v577
    %700 = vmatpush.bf16.msra.mxu0 %v571
    %701 = vmatpush.bf16.msra.mxu0 %v565
    %702 = vmatpush.bf16.msra.mxu0 %v559
    %703 = vmatpush.bf16.msra.mxu0 %v553
    %704 = vmatpush.bf16.msra.mxu0 %v547
    %705 = vmatpush.bf16.msra.mxu0 %v541
    %706 = vmatmul.bf16.gmra.mxu0 %v202
    %v707 = vpop.f32.mrf.mxu0
    %v708 = vadd.f32 %v695, %v707
    %v709 = vpop.f32.mrf.mxu0
    %710 = vdwg.mxu0
    %711 = vmatpush.bf16.msra.mxu0 %v536
    %712 = vmatpush.bf16.msra.mxu0 %v530
    %713 = vmatpush.bf16.msra.mxu0 %v524
    %714 = vmatpush.bf16.msra.mxu0 %v518
    %715 = vmatpush.bf16.msra.mxu0 %v512
    %716 = vmatpush.bf16.msra.mxu0 %v506
    %717 = vmatpush.bf16.msra.mxu0 %v500
    %718 = vmatpush.bf16.msra.mxu0 %v494
    %719 = vmatmul.bf16.gmra.mxu0 %v201
    %v720 = vpop.f32.mrf.mxu0
    %v721 = vadd.f32 %v187, %v720
    %v722 = vpop.f32.mrf.mxu0
    %723 = vdwg.mxu0
    %724 = vmatpush.bf16.msra.mxu0 %v584
    %725 = vmatpush.bf16.msra.mxu0 %v578
    %726 = vmatpush.bf16.msra.mxu0 %v572
    %727 = vmatpush.bf16.msra.mxu0 %v566
    %728 = vmatpush.bf16.msra.mxu0 %v560
    %729 = vmatpush.bf16.msra.mxu0 %v554
    %730 = vmatpush.bf16.msra.mxu0 %v548
    %731 = vmatpush.bf16.msra.mxu0 %v542
    %732 = vmatmul.bf16.gmra.mxu0 %v202
    %v733 = vpop.f32.mrf.mxu0
    %v734 = vadd.f32 %v721, %v733
    %v735 = vpop.f32.mrf.mxu0
    %736 = vdwg.mxu0
    %737 = vmatpush.bf16.msra.mxu0 %v537
    %738 = vmatpush.bf16.msra.mxu0 %v531
    %739 = vmatpush.bf16.msra.mxu0 %v525
    %740 = vmatpush.bf16.msra.mxu0 %v519
    %741 = vmatpush.bf16.msra.mxu0 %v513
    %742 = vmatpush.bf16.msra.mxu0 %v507
    %743 = vmatpush.bf16.msra.mxu0 %v501
    %744 = vmatpush.bf16.msra.mxu0 %v495
    %745 = vmatmul.bf16.gmra.mxu0 %v201
    %v746 = vpop.f32.mrf.mxu0
    %v747 = vadd.f32 %v188, %v746
    %v748 = vpop.f32.mrf.mxu0
    %749 = vdwg.mxu0
    %750 = vmatpush.bf16.msra.mxu0 %v585
    %751 = vmatpush.bf16.msra.mxu0 %v579
    %752 = vmatpush.bf16.msra.mxu0 %v573
    %753 = vmatpush.bf16.msra.mxu0 %v567
    %754 = vmatpush.bf16.msra.mxu0 %v561
    %755 = vmatpush.bf16.msra.mxu0 %v555
    %756 = vmatpush.bf16.msra.mxu0 %v549
    %757 = vmatpush.bf16.msra.mxu0 %v543
    %758 = vmatmul.bf16.gmra.mxu0 %v202
    %v759 = vpop.f32.mrf.mxu0
    %v760 = vadd.f32 %v747, %v759
    %v761 = vpop.f32.mrf.mxu0
    %762 = vdwg.mxu0
    %763 = vmatpush.bf16.msra.mxu0 %v538
    %764 = vmatpush.bf16.msra.mxu0 %v532
    %765 = vmatpush.bf16.msra.mxu0 %v526
    %766 = vmatpush.bf16.msra.mxu0 %v520
    %767 = vmatpush.bf16.msra.mxu0 %v514
    %768 = vmatpush.bf16.msra.mxu0 %v508
    %769 = vmatpush.bf16.msra.mxu0 %v502
    %770 = vmatpush.bf16.msra.mxu0 %v496
    %771 = vmatmul.bf16.gmra.mxu0 %v201
    %v772 = vpop.f32.mrf.mxu0
    %v773 = vadd.f32 %v189, %v772
    %v774 = vpop.f32.mrf.mxu0
    %775 = vdwg.mxu0
    %776 = vmatpush.bf16.msra.mxu0 %v586
    %777 = vmatpush.bf16.msra.mxu0 %v580
    %778 = vmatpush.bf16.msra.mxu0 %v574
    %779 = vmatpush.bf16.msra.mxu0 %v568
    %780 = vmatpush.bf16.msra.mxu0 %v562
    %781 = vmatpush.bf16.msra.mxu0 %v556
    %782 = vmatpush.bf16.msra.mxu0 %v550
    %783 = vmatpush.bf16.msra.mxu0 %v544
    %784 = vmatmul.bf16.gmra.mxu0 %v202
    %v785 = vpop.f32.mrf.mxu0
    %v786 = vadd.f32 %v773, %v785
    %v787 = vpop.f32.mrf.mxu0
    %788 = vdwg.mxu0
    %789 = vmatpush.bf16.msra.mxu0 %v539
    %790 = vmatpush.bf16.msra.mxu0 %v533
    %791 = vmatpush.bf16.msra.mxu0 %v527
    %792 = vmatpush.bf16.msra.mxu0 %v521
    %793 = vmatpush.bf16.msra.mxu0 %v515
    %794 = vmatpush.bf16.msra.mxu0 %v509
    %795 = vmatpush.bf16.msra.mxu0 %v503
    %796 = vmatpush.bf16.msra.mxu0 %v497
    %797 = vmatmul.bf16.gmra.mxu0 %v201
    %v798 = vpop.f32.mrf.mxu0
    %v799 = vadd.f32 %v190, %v798
    %v800 = vpop.f32.mrf.mxu0
    %801 = vdwg.mxu0
    %802 = vmatpush.bf16.msra.mxu0 %v587
    %803 = vmatpush.bf16.msra.mxu0 %v581
    %804 = vmatpush.bf16.msra.mxu0 %v575
    %805 = vmatpush.bf16.msra.mxu0 %v569
    %806 = vmatpush.bf16.msra.mxu0 %v563
    %807 = vmatpush.bf16.msra.mxu0 %v557
    %808 = vmatpush.bf16.msra.mxu0 %v551
    %809 = vmatpush.bf16.msra.mxu0 %v545
    %810 = vmatmul.bf16.gmra.mxu0 %v202
    %v811 = vpop.f32.mrf.mxu0
    %v812 = vadd.f32 %v799, %v811
    %v813 = vpop.f32.mrf.mxu0
    %814 = vdwg.mxu0
    %815 = vmatpush.bf16.msra.mxu0 %v540
    %816 = vmatpush.bf16.msra.mxu0 %v534
    %817 = vmatpush.bf16.msra.mxu0 %v528
    %818 = vmatpush.bf16.msra.mxu0 %v522
    %819 = vmatpush.bf16.msra.mxu0 %v516
    %820 = vmatpush.bf16.msra.mxu0 %v510
    %821 = vmatpush.bf16.msra.mxu0 %v504
    %822 = vmatpush.bf16.msra.mxu0 %v498
    %823 = vmatmul.bf16.gmra.mxu0 %v201
    %v824 = vpop.f32.mrf.mxu0
    %v825 = vadd.f32 %v191, %v824
    %v826 = vpop.f32.mrf.mxu0
    %827 = vdwg.mxu0
    %828 = vmatpush.bf16.msra.mxu0 %v588
    %829 = vmatpush.bf16.msra.mxu0 %v582
    %830 = vmatpush.bf16.msra.mxu0 %v576
    %831 = vmatpush.bf16.msra.mxu0 %v570
    %832 = vmatpush.bf16.msra.mxu0 %v564
    %833 = vmatpush.bf16.msra.mxu0 %v558
    %834 = vmatpush.bf16.msra.mxu0 %v552
    %835 = vmatpush.bf16.msra.mxu0 %v546
    %836 = vmatmul.bf16.gmra.mxu0 %v202
    %v837 = vpop.f32.mrf.mxu0
    %v838 = vadd.f32 %v825, %v837
    %v839 = vpop.f32.mrf.mxu0
    %840 = vdwg.mxu0
    %v841 = vmax.f32 %v708, 0.0
    %v842 = vmax.f32 %v734, 0.0
    %v843 = vmax.f32 %v760, 0.0
    %v844 = vmax.f32 %v786, 0.0
    %v845 = vmax.f32 %v812, 0.0
    %v846 = vmax.f32 %v838, 0.0
    %v847 = vpack.c.bf16 %v841, %v841
    %v848 = vpack.c.bf16 %v842, %v842
    %v849 = vpack.c.bf16 %v843, %v843
    %v850 = vpack.c.bf16 %v844, %v844
    %v851 = vpack.c.bf16 %v845, %v845
    %v852 = vpack.c.bf16 %v846, %v846
    %v853 = vld [vmem:[#allocation8] sm:$0xff]
    %v854 = vld [vmem:[#allocation8 + $0x8] sm:$0xf]
    %v855 = vld [vmem:[#allocation8 + $0xc] sm:$0xff]
    %v856 = vld [vmem:[#allocation8 + $0x14] sm:$0xf]
    %v857 = vld [vmem:[#allocation8 + $0x18] sm:$0xff]
    %v858 = vld [vmem:[#allocation8 + $0x20] sm:$0xf]
    %v859 = vld [vmem:[#allocation8 + $0x24] sm:$0xff]
    %v860 = vld [vmem:[#allocation8 + $0x2c] sm:$0xf]
    %v861 = vld [vmem:[#allocation8 + $0x30] sm:$0xff]
    %v862 = vld [vmem:[#allocation8 + $0x38] sm:$0xf]
    %v863 = vld [vmem:[#allocation8 + $0x3c] sm:$0xff]
    %v864 = vld [vmem:[#allocation8 + $0x44] sm:$0xf]
    %v865 = vld [vmem:[#allocation8 + $0x48] sm:$0xff]
    %v866 = vld [vmem:[#allocation8 + $0x50] sm:$0xf]
    %v867 = vld [vmem:[#allocation8 + $0x54] sm:$0xff]
    %v868 = vld [vmem:[#allocation8 + $0x5c] sm:$0xf]
    %v869 = vld [vmem:[#allocation8 + $0x60] sm:$0xff]
    %v870 = vld [vmem:[#allocation8 + $0x68] sm:$0xf]
    %v871 = vld [vmem:[#allocation8 + $0x6c] sm:$0xff]
    %v872 = vld [vmem:[#allocation8 + $0x74] sm:$0xf]
    %v873 = vld [vmem:[#allocation8 + $0x78] sm:$0xff]
    %v874 = vld [vmem:[#allocation8 + $0x80] sm:$0xf]
    %v875 = vld [vmem:[#allocation8 + $0x84] sm:$0xff]
    %v876 = vld [vmem:[#allocation8 + $0x8c] sm:$0xf]
    %v877 = vld [vmem:[#allocation8 + $0x90] sm:$0xff]
    %v878 = vld [vmem:[#allocation8 + $0x98] sm:$0xf]
    %v879 = vld [vmem:[#allocation8 + $0x9c] sm:$0xff]
    %v880 = vld [vmem:[#allocation8 + $0xa4] sm:$0xf]
    %v881 = vld [vmem:[#allocation8 + $0xa8] sm:$0xff]
    %v882 = vld [vmem:[#allocation8 + $0xb0] sm:$0xf]
    %v883 = vld [vmem:[#allocation8 + $0xb4] sm:$0xff]
    %v884 = vld [vmem:[#allocation8 + $0xbc] sm:$0xf]
    %v885 = vld [vmem:[#allocation8 + $0xc0] sm:$0xff]
    %v886 = vld [vmem:[#allocation8 + $0xc8] sm:$0xf]
    %v887 = vld [vmem:[#allocation8 + $0xcc] sm:$0xff]
    %v888 = vld [vmem:[#allocation8 + $0xd4] sm:$0xf]
    %v889 = vld [vmem:[#allocation8 + $0xd8] sm:$0xff]
    %v890 = vld [vmem:[#allocation8 + $0xe0] sm:$0xf]
    %v891 = vld [vmem:[#allocation8 + $0xe4] sm:$0xff]
    %v892 = vld [vmem:[#allocation8 + $0xec] sm:$0xf]
    %v893 = vld [vmem:[#allocation8 + $0xf0] sm:$0xff]
    %v894 = vld [vmem:[#allocation8 + $0xf8] sm:$0xf]
    %v895 = vld [vmem:[#allocation8 + $0xfc] sm:$0xff]
    %v896 = vld [vmem:[#allocation8 + $0x104] sm:$0xf]
    %v897 = vld [vmem:[#allocation8 + $0x108] sm:$0xff]
    %v898 = vld [vmem:[#allocation8 + $0x110] sm:$0xf]
    %v899 = vld [vmem:[#allocation8 + $0x114] sm:$0xff]
    %v900 = vld [vmem:[#allocation8 + $0x11c] sm:$0xf]
    %v901 = vld [vmem:[#allocation8 + $0x120] sm:$0xff]
    %v902 = vld [vmem:[#allocation8 + $0x128] sm:$0xf]
    %v903 = vld [vmem:[#allocation8 + $0x12c] sm:$0xff]
    %v904 = vld [vmem:[#allocation8 + $0x134] sm:$0xf]
    %v905 = vld [vmem:[#allocation8 + $0x138] sm:$0xff]
    %v906 = vld [vmem:[#allocation8 + $0x140] sm:$0xf]
    %v907 = vld [vmem:[#allocation8 + $0x144] sm:$0xff]
    %v908 = vld [vmem:[#allocation8 + $0x14c] sm:$0xf]
    %v909 = vld [vmem:[#allocation8 + $0x150] sm:$0xff]
    %v910 = vld [vmem:[#allocation8 + $0x158] sm:$0xf]
    %v911 = vld [vmem:[#allocation8 + $0x15c] sm:$0xff]
    %v912 = vld [vmem:[#allocation8 + $0x164] sm:$0xf]
    %v913 = vld [vmem:[#allocation8 + $0x168] sm:$0xff]
    %v914 = vld [vmem:[#allocation8 + $0x170] sm:$0xf]
    %v915 = vld [vmem:[#allocation8 + $0x174] sm:$0xff]
    %v916 = vld [vmem:[#allocation8 + $0x17c] sm:$0xf]
    %v917 = vld [vmem:[#allocation8 + $0x180] sm:$0xff]
    %v918 = vld [vmem:[#allocation8 + $0x188] sm:$0xf]
    %v919 = vld [vmem:[#allocation8 + $0x18c] sm:$0xff]
    %v920 = vld [vmem:[#allocation8 + $0x194] sm:$0xf]
    %v921 = vld [vmem:[#allocation8 + $0x198] sm:$0xff]
    %v922 = vld [vmem:[#allocation8 + $0x1a0] sm:$0xf]
    %v923 = vld [vmem:[#allocation8 + $0x1a4] sm:$0xff]
    %v924 = vld [vmem:[#allocation8 + $0x1ac] sm:$0xf]
    %v925 = vld [vmem:[#allocation8 + $0x1b0] sm:$0xff]
    %v926 = vld [vmem:[#allocation8 + $0x1b8] sm:$0xf]
    %v927 = vld [vmem:[#allocation8 + $0x1bc] sm:$0xff]
    %v928 = vld [vmem:[#allocation8 + $0x1c4] sm:$0xf]
    %v929 = vld [vmem:[#allocation8 + $0x1c8] sm:$0xff]
    %v930 = vld [vmem:[#allocation8 + $0x1d0] sm:$0xf]
    %v931 = vld [vmem:[#allocation8 + $0x1d4] sm:$0xff]
    %v932 = vld [vmem:[#allocation8 + $0x1dc] sm:$0xf]
    %v933 = vld [vmem:[#allocation8 + $0x1e0] sm:$0xff]
    %v934 = vld [vmem:[#allocation8 + $0x1e8] sm:$0xf]
    %v935 = vld [vmem:[#allocation8 + $0x1ec] sm:$0xff]
    %v936 = vld [vmem:[#allocation8 + $0x1f4] sm:$0xf]
    %v937 = vld [vmem:[#allocation8 + $0x1f8] sm:$0xff]
    %v938 = vld [vmem:[#allocation8 + $0x200] sm:$0xf]
    %v939 = vld [vmem:[#allocation8 + $0x204] sm:$0xff]
    %v940 = vld [vmem:[#allocation8 + $0x20c] sm:$0xf]
    %v941 = vld [vmem:[#allocation8 + $0x210] sm:$0xff]
    %v942 = vld [vmem:[#allocation8 + $0x218] sm:$0xf]
    %v943 = vld [vmem:[#allocation8 + $0x21c] sm:$0xff]
    %v944 = vld [vmem:[#allocation8 + $0x224] sm:$0xf]
    %v945 = vld [vmem:[#allocation8 + $0x228] sm:$0xff]
    %v946 = vld [vmem:[#allocation8 + $0x230] sm:$0xf]
    %v947 = vld [vmem:[#allocation8 + $0x234] sm:$0xff]
    %v948 = vld [vmem:[#allocation8 + $0x23c] sm:$0xf]
    %v949 = vld [vmem:[#allocation8 + $0x240] sm:$0xff]
    %v950 = vld [vmem:[#allocation8 + $0x248] sm:$0xf]
    %v951 = vld [vmem:[#allocation8 + $0x24c] sm:$0xff]
    %v952 = vld [vmem:[#allocation8 + $0x254] sm:$0xf]
    %v953 = vld [vmem:[#allocation8 + $0x258] sm:$0xff]
    %v954 = vld [vmem:[#allocation8 + $0x260] sm:$0xf]
    %v955 = vld [vmem:[#allocation8 + $0x264] sm:$0xff]
    %v956 = vld [vmem:[#allocation8 + $0x26c] sm:$0xf]
    %v957 = vld [vmem:[#allocation8 + $0x270] sm:$0xff]
    %v958 = vld [vmem:[#allocation8 + $0x278] sm:$0xf]
    %v959 = vld [vmem:[#allocation8 + $0x27c] sm:$0xff]
    %v960 = vld [vmem:[#allocation8 + $0x284] sm:$0xf]
    %v961 = vld [vmem:[#allocation8 + $0x288] sm:$0xff]
    %v962 = vld [vmem:[#allocation8 + $0x290] sm:$0xf]
    %v963 = vld [vmem:[#allocation8 + $0x294] sm:$0xff]
    %v964 = vld [vmem:[#allocation8 + $0x29c] sm:$0xf]
    %v965 = vld [vmem:[#allocation8 + $0x2a0] sm:$0xff]
    %v966 = vld [vmem:[#allocation8 + $0x2a8] sm:$0xf]
    %v967 = vld [vmem:[#allocation8 + $0x2ac] sm:$0xff]
    %v968 = vld [vmem:[#allocation8 + $0x2b4] sm:$0xf]
    %v969 = vld [vmem:[#allocation8 + $0x2b8] sm:$0xff]
    %v970 = vld [vmem:[#allocation8 + $0x2c0] sm:$0xf]
    %v971 = vld [vmem:[#allocation8 + $0x2c4] sm:$0xff]
    %v972 = vld [vmem:[#allocation8 + $0x2cc] sm:$0xf]
    %v973 = vld [vmem:[#allocation8 + $0x2d0] sm:$0xff]
    %v974 = vld [vmem:[#allocation8 + $0x2d8] sm:$0xf]
    %v975 = vld [vmem:[#allocation8 + $0x2dc] sm:$0xff]
    %v976 = vld [vmem:[#allocation8 + $0x2e4] sm:$0xf]
    %v977 = vld [vmem:[#allocation8 + $0x2e8] sm:$0xff]
    %v978 = vld [vmem:[#allocation8 + $0x2f0] sm:$0xf]
    %v979 = vld [vmem:[#allocation8 + $0x2f4] sm:$0xff]
    %v980 = vld [vmem:[#allocation8 + $0x2fc] sm:$0xf]
    %v981 = vld [vmem:[#allocation8 + $0x300] sm:$0xff]
    %v982 = vld [vmem:[#allocation8 + $0x308] sm:$0xf]
    %v983 = vld [vmem:[#allocation8 + $0x30c] sm:$0xff]
    %v984 = vld [vmem:[#allocation8 + $0x314] sm:$0xf]
    %v985 = vld [vmem:[#allocation8 + $0x318] sm:$0xff]
    %v986 = vld [vmem:[#allocation8 + $0x320] sm:$0xf]
    %v987 = vld [vmem:[#allocation8 + $0x324] sm:$0xff]
    %v988 = vld [vmem:[#allocation8 + $0x32c] sm:$0xf]
    %v989 = vld [vmem:[#allocation8 + $0x330] sm:$0xff]
    %v990 = vld [vmem:[#allocation8 + $0x338] sm:$0xf]
    %v991 = vld [vmem:[#allocation8 + $0x33c] sm:$0xff]
    %v992 = vld [vmem:[#allocation8 + $0x344] sm:$0xf]
    %v993 = vld [vmem:[#allocation8 + $0x348] sm:$0xff]
    %v994 = vld [vmem:[#allocation8 + $0x350] sm:$0xf]
    %v995 = vld [vmem:[#allocation8 + $0x354] sm:$0xff]
    %v996 = vld [vmem:[#allocation8 + $0x35c] sm:$0xf]
    %v997 = vld [vmem:[#allocation8 + $0x360] sm:$0xff]
    %v998 = vld [vmem:[#allocation8 + $0x368] sm:$0xf]
    %v999 = vld [vmem:[#allocation8 + $0x36c] sm:$0xff]
    %v1000 = vld [vmem:[#allocation8 + $0x374] sm:$0xf]
    %v1001 = vld [vmem:[#allocation8 + $0x378] sm:$0xff]
    %v1002 = vld [vmem:[#allocation8 + $0x380] sm:$0xf]
    %v1003 = vld [vmem:[#allocation8 + $0x384] sm:$0xff]
    %v1004 = vld [vmem:[#allocation8 + $0x38c] sm:$0xf]
    %v1005 = vld [vmem:[#allocation8 + $0x390] sm:$0xff]
    %v1006 = vld [vmem:[#allocation8 + $0x398] sm:$0xf]
    %v1007 = vld [vmem:[#allocation8 + $0x39c] sm:$0xff]
    %v1008 = vld [vmem:[#allocation8 + $0x3a4] sm:$0xf]
    %v1009 = vld [vmem:[#allocation8 + $0x3a8] sm:$0xff]
    %v1010 = vld [vmem:[#allocation8 + $0x3b0] sm:$0xf]
    %v1011 = vld [vmem:[#allocation8 + $0x3b4] sm:$0xff]
    %v1012 = vld [vmem:[#allocation8 + $0x3bc] sm:$0xf]
    %v1013 = vld [vmem:[#allocation8 + $0x3c0] sm:$0xff]
    %v1014 = vld [vmem:[#allocation8 + $0x3c8] sm:$0xf]
    %v1015 = vld [vmem:[#allocation8 + $0x3cc] sm:$0xff]
    %v1016 = vld [vmem:[#allocation8 + $0x3d4] sm:$0xf]
    %v1017 = vld [vmem:[#allocation8 + $0x3d8] sm:$0xff]
    %v1018 = vld [vmem:[#allocation8 + $0x3e0] sm:$0xf]
    %v1019 = vld [vmem:[#allocation8 + $0x3e4] sm:$0xff]
    %v1020 = vld [vmem:[#allocation8 + $0x3ec] sm:$0xf]
    %v1021 = vld [vmem:[#allocation8 + $0x3f0] sm:$0xff]
    %v1022 = vld [vmem:[#allocation8 + $0x3f8] sm:$0xf]
    %v1023 = vld [vmem:[#allocation8 + $0x3fc] sm:$0xff]
    %v1024 = vld [vmem:[#allocation8 + $0x404] sm:$0xf]
    %v1025 = vld [vmem:[#allocation8 + $0x408] sm:$0xff]
    %v1026 = vld [vmem:[#allocation8 + $0x410] sm:$0xf]
    %v1027 = vld [vmem:[#allocation8 + $0x414] sm:$0xff]
    %v1028 = vld [vmem:[#allocation8 + $0x41c] sm:$0xf]
    %v1029 = vld [vmem:[#allocation8 + $0x420] sm:$0xff]
    %v1030 = vld [vmem:[#allocation8 + $0x428] sm:$0xf]
    %v1031 = vld [vmem:[#allocation8 + $0x42c] sm:$0xff]
    %v1032 = vld [vmem:[#allocation8 + $0x434] sm:$0xf]
    %v1033 = vld [vmem:[#allocation8 + $0x438] sm:$0xff]
    %v1034 = vld [vmem:[#allocation8 + $0x440] sm:$0xf]
    %v1035 = vld [vmem:[#allocation8 + $0x444] sm:$0xff]
    %v1036 = vld [vmem:[#allocation8 + $0x44c] sm:$0xf]
    %v1037 = vld [vmem:[#allocation8 + $0x450] sm:$0xff]
    %v1038 = vld [vmem:[#allocation8 + $0x458] sm:$0xf]
    %v1039 = vld [vmem:[#allocation8 + $0x45c] sm:$0xff]
    %v1040 = vld [vmem:[#allocation8 + $0x464] sm:$0xf]
    %v1041 = vld [vmem:[#allocation8 + $0x468] sm:$0xff]
    %v1042 = vld [vmem:[#allocation8 + $0x470] sm:$0xf]
    %v1043 = vld [vmem:[#allocation8 + $0x474] sm:$0xff]
    %v1044 = vld [vmem:[#allocation8 + $0x47c] sm:$0xf]
    %v1045 = vld [vmem:[%s4] sm:$0x7]
    %v1047 = vperm.slane %v1045, 0
    %v1048 = vperm.slane %v1045, 1
    %v1049 = vperm.slane %v1045, 2
    %v1245 = vunpack.c.l.b16 %v853
    %v1246 = vunpack.c.h.b16 %v853
    %v1247 = vunpack.c.l.b16 %v854
    %v1248 = vunpack.c.l.b16 %v855
    %v1249 = vunpack.c.h.b16 %v855
    %v1250 = vunpack.c.l.b16 %v856
    %v1251 = vunpack.c.l.b16 %v857
    %v1252 = vunpack.c.h.b16 %v857
    %v1253 = vunpack.c.l.b16 %v858
    %v1254 = vunpack.c.l.b16 %v859
    %v1255 = vunpack.c.h.b16 %v859
    %v1256 = vunpack.c.l.b16 %v860
    %v1257 = vunpack.c.l.b16 %v861
    %v1258 = vunpack.c.h.b16 %v861
    %v1259 = vunpack.c.l.b16 %v862
    %v1260 = vunpack.c.l.b16 %v863
    %v1261 = vunpack.c.h.b16 %v863
    %v1262 = vunpack.c.l.b16 %v864
    %v1263 = vunpack.c.l.b16 %v865
    %v1264 = vunpack.c.h.b16 %v865
    %v1265 = vunpack.c.l.b16 %v866
    %v1266 = vunpack.c.l.b16 %v867
    %v1267 = vunpack.c.h.b16 %v867
    %v1268 = vunpack.c.l.b16 %v868
    %v1269 = vunpack.c.l.b16 %v869
    %v1270 = vunpack.c.h.b16 %v869
    %v1271 = vunpack.c.l.b16 %v870
    %v1272 = vunpack.c.l.b16 %v871
    %v1273 = vunpack.c.h.b16 %v871
    %v1274 = vunpack.c.l.b16 %v872
    %v1275 = vunpack.c.l.b16 %v873
    %v1276 = vunpack.c.h.b16 %v873
    %v1277 = vunpack.c.l.b16 %v874
    %v1278 = vunpack.c.l.b16 %v875
    %v1279 = vunpack.c.h.b16 %v875
    %v1280 = vunpack.c.l.b16 %v876
    %v1281 = vunpack.c.l.b16 %v877
    %v1282 = vunpack.c.h.b16 %v877
    %v1283 = vunpack.c.l.b16 %v878
    %v1284 = vunpack.c.l.b16 %v879
    %v1285 = vunpack.c.h.b16 %v879
    %v1286 = vunpack.c.l.b16 %v880
    %v1287 = vunpack.c.l.b16 %v881
    %v1288 = vunpack.c.h.b16 %v881
    %v1289 = vunpack.c.l.b16 %v882
    %v1290 = vunpack.c.l.b16 %v883
    %v1291 = vunpack.c.h.b16 %v883
    %v1292 = vunpack.c.l.b16 %v884
    %v1293 = vunpack.c.l.b16 %v885
    %v1294 = vunpack.c.h.b16 %v885
    %v1295 = vunpack.c.l.b16 %v886
    %v1296 = vunpack.c.l.b16 %v887
    %v1297 = vunpack.c.h.b16 %v887
    %v1298 = vunpack.c.l.b16 %v888
    %v1299 = vunpack.c.l.b16 %v889
    %v1300 = vunpack.c.h.b16 %v889
    %v1301 = vunpack.c.l.b16 %v890
    %v1302 = vunpack.c.l.b16 %v891
    %v1303 = vunpack.c.h.b16 %v891
    %v1304 = vunpack.c.l.b16 %v892
    %v1305 = vunpack.c.l.b16 %v893
    %v1306 = vunpack.c.h.b16 %v893
    %v1307 = vunpack.c.l.b16 %v894
    %v1308 = vunpack.c.l.b16 %v895
    %v1309 = vunpack.c.h.b16 %v895
    %v1310 = vunpack.c.l.b16 %v896
    %v1311 = vunpack.c.l.b16 %v897
    %v1312 = vunpack.c.h.b16 %v897
    %v1313 = vunpack.c.l.b16 %v898
    %v1314 = vunpack.c.l.b16 %v899
    %v1315 = vunpack.c.h.b16 %v899
    %v1316 = vunpack.c.l.b16 %v900
    %v1317 = vunpack.c.l.b16 %v901
    %v1318 = vunpack.c.h.b16 %v901
    %v1319 = vunpack.c.l.b16 %v902
    %v1320 = vunpack.c.l.b16 %v903
    %v1321 = vunpack.c.h.b16 %v903
    %v1322 = vunpack.c.l.b16 %v904
    %v1323 = vunpack.c.l.b16 %v905
    %v1324 = vunpack.c.h.b16 %v905
    %v1325 = vunpack.c.l.b16 %v906
    %v1326 = vunpack.c.l.b16 %v907
    %v1327 = vunpack.c.h.b16 %v907
    %v1328 = vunpack.c.l.b16 %v908
    %v1329 = vunpack.c.l.b16 %v909
    %v1330 = vunpack.c.h.b16 %v909
    %v1331 = vunpack.c.l.b16 %v910
    %v1332 = vunpack.c.l.b16 %v911
    %v1333 = vunpack.c.h.b16 %v911
    %v1334 = vunpack.c.l.b16 %v912
    %v1335 = vunpack.c.l.b16 %v913
    %v1336 = vunpack.c.h.b16 %v913
    %v1337 = vunpack.c.l.b16 %v914
    %v1338 = vunpack.c.l.b16 %v915
    %v1339 = vunpack.c.h.b16 %v915
    %v1340 = vunpack.c.l.b16 %v916
    %v1341 = vunpack.c.l.b16 %v917
    %v1342 = vunpack.c.h.b16 %v917
    %v1343 = vunpack.c.l.b16 %v918
    %v1344 = vunpack.c.l.b16 %v919
    %v1345 = vunpack.c.h.b16 %v919
    %v1346 = vunpack.c.l.b16 %v920
    %v1347 = vunpack.c.l.b16 %v921
    %v1348 = vunpack.c.h.b16 %v921
    %v1349 = vunpack.c.l.b16 %v922
    %v1350 = vunpack.c.l.b16 %v923
    %v1351 = vunpack.c.h.b16 %v923
    %v1352 = vunpack.c.l.b16 %v924
    %v1353 = vunpack.c.l.b16 %v925
    %v1354 = vunpack.c.h.b16 %v925
    %v1355 = vunpack.c.l.b16 %v926
    %v1356 = vunpack.c.l.b16 %v927
    %v1357 = vunpack.c.h.b16 %v927
    %v1358 = vunpack.c.l.b16 %v928
    %v1359 = vunpack.c.l.b16 %v929
    %v1360 = vunpack.c.h.b16 %v929
    %v1361 = vunpack.c.l.b16 %v930
    %v1362 = vunpack.c.l.b16 %v931
    %v1363 = vunpack.c.h.b16 %v931
    %v1364 = vunpack.c.l.b16 %v932
    %v1365 = vunpack.c.l.b16 %v933
    %v1366 = vunpack.c.h.b16 %v933
    %v1367 = vunpack.c.l.b16 %v934
    %v1368 = vunpack.c.l.b16 %v935
    %v1369 = vunpack.c.h.b16 %v935
    %v1370 = vunpack.c.l.b16 %v936
    %v1371 = vunpack.c.l.b16 %v937
    %v1372 = vunpack.c.h.b16 %v937
    %v1373 = vunpack.c.l.b16 %v938
    %v1374 = vunpack.c.l.b16 %v939
    %v1375 = vunpack.c.h.b16 %v939
    %v1376 = vunpack.c.l.b16 %v940
    %v1377 = vunpack.c.l.b16 %v941
    %v1378 = vunpack.c.h.b16 %v941
    %v1379 = vunpack.c.l.b16 %v942
    %v1380 = vunpack.c.l.b16 %v943
    %v1381 = vunpack.c.h.b16 %v943
    %v1382 = vunpack.c.l.b16 %v944
    %v1383 = vunpack.c.l.b16 %v945
    %v1384 = vunpack.c.h.b16 %v945
    %v1385 = vunpack.c.l.b16 %v946
    %v1386 = vunpack.c.l.b16 %v947
    %v1387 = vunpack.c.h.b16 %v947
    %v1388 = vunpack.c.l.b16 %v948
    %v1389 = vunpack.c.l.b16 %v949
    %v1390 = vunpack.c.h.b16 %v949
    %v1391 = vunpack.c.l.b16 %v950
    %v1392 = vunpack.c.l.b16 %v951
    %v1393 = vunpack.c.h.b16 %v951
    %v1394 = vunpack.c.l.b16 %v952
    %v1395 = vunpack.c.l.b16 %v953
    %v1396 = vunpack.c.h.b16 %v953
    %v1397 = vunpack.c.l.b16 %v954
    %v1398 = vunpack.c.l.b16 %v955
    %v1399 = vunpack.c.h.b16 %v955
    %v1400 = vunpack.c.l.b16 %v956
    %v1401 = vunpack.c.l.b16 %v957
    %v1402 = vunpack.c.h.b16 %v957
    %v1403 = vunpack.c.l.b16 %v958
    %v1404 = vunpack.c.l.b16 %v959
    %v1405 = vunpack.c.h.b16 %v959
    %v1406 = vunpack.c.l.b16 %v960
    %v1407 = vunpack.c.l.b16 %v961
    %v1408 = vunpack.c.h.b16 %v961
    %v1409 = vunpack.c.l.b16 %v962
    %v1410 = vunpack.c.l.b16 %v963
    %v1411 = vunpack.c.h.b16 %v963
    %v1412 = vunpack.c.l.b16 %v964
    %v1413 = vunpack.c.l.b16 %v965
    %v1414 = vunpack.c.h.b16 %v965
    %v1415 = vunpack.c.l.b16 %v966
    %v1416 = vunpack.c.l.b16 %v967
    %v1417 = vunpack.c.h.b16 %v967
    %v1418 = vunpack.c.l.b16 %v968
    %v1419 = vunpack.c.l.b16 %v969
    %v1420 = vunpack.c.h.b16 %v969
    %v1421 = vunpack.c.l.b16 %v970
    %v1422 = vunpack.c.l.b16 %v971
    %v1423 = vunpack.c.h.b16 %v971
    %v1424 = vunpack.c.l.b16 %v972
    %v1425 = vunpack.c.l.b16 %v973
    %v1426 = vunpack.c.h.b16 %v973
    %v1427 = vunpack.c.l.b16 %v974
    %v1428 = vunpack.c.l.b16 %v975
    %v1429 = vunpack.c.h.b16 %v975
    %v1430 = vunpack.c.l.b16 %v976
    %v1431 = vunpack.c.l.b16 %v977
    %v1432 = vunpack.c.h.b16 %v977
    %v1433 = vunpack.c.l.b16 %v978
    %v1434 = vunpack.c.l.b16 %v979
    %v1435 = vunpack.c.h.b16 %v979
    %v1436 = vunpack.c.l.b16 %v980
    %v1437 = vunpack.c.l.b16 %v981
    %v1438 = vunpack.c.h.b16 %v981
    %v1439 = vunpack.c.l.b16 %v982
    %v1440 = vunpack.c.l.b16 %v983
    %v1441 = vunpack.c.h.b16 %v983
    %v1442 = vunpack.c.l.b16 %v984
    %v1443 = vunpack.c.l.b16 %v985
    %v1444 = vunpack.c.h.b16 %v985
    %v1445 = vunpack.c.l.b16 %v986
    %v1446 = vunpack.c.l.b16 %v987
    %v1447 = vunpack.c.h.b16 %v987
    %v1448 = vunpack.c.l.b16 %v988
    %v1449 = vunpack.c.l.b16 %v989
    %v1450 = vunpack.c.h.b16 %v989
    %v1451 = vunpack.c.l.b16 %v990
    %v1452 = vunpack.c.l.b16 %v991
    %v1453 = vunpack.c.h.b16 %v991
    %v1454 = vunpack.c.l.b16 %v992
    %v1455 = vunpack.c.l.b16 %v993
    %v1456 = vunpack.c.h.b16 %v993
    %v1457 = vunpack.c.l.b16 %v994
    %v1458 = vunpack.c.l.b16 %v995
    %v1459 = vunpack.c.h.b16 %v995
    %v1460 = vunpack.c.l.b16 %v996
    %v1461 = vunpack.c.l.b16 %v997
    %v1462 = vunpack.c.h.b16 %v997
    %v1463 = vunpack.c.l.b16 %v998
    %v1464 = vunpack.c.l.b16 %v999
    %v1465 = vunpack.c.h.b16 %v999
    %v1466 = vunpack.c.l.b16 %v1000
    %v1467 = vunpack.c.l.b16 %v1001
    %v1468 = vunpack.c.h.b16 %v1001
    %v1469 = vunpack.c.l.b16 %v1002
    %v1470 = vunpack.c.l.b16 %v1003
    %v1471 = vunpack.c.h.b16 %v1003
    %v1472 = vunpack.c.l.b16 %v1004
    %v1473 = vunpack.c.l.b16 %v1005
    %v1474 = vunpack.c.h.b16 %v1005
    %v1475 = vunpack.c.l.b16 %v1006
    %v1476 = vunpack.c.l.b16 %v1007
    %v1477 = vunpack.c.h.b16 %v1007
    %v1478 = vunpack.c.l.b16 %v1008
    %v1479 = vunpack.c.l.b16 %v1009
    %v1480 = vunpack.c.h.b16 %v1009
    %v1481 = vunpack.c.l.b16 %v1010
    %v1482 = vunpack.c.l.b16 %v1011
    %v1483 = vunpack.c.h.b16 %v1011
    %v1484 = vunpack.c.l.b16 %v1012
    %v1485 = vunpack.c.l.b16 %v1013
    %v1486 = vunpack.c.h.b16 %v1013
    %v1487 = vunpack.c.l.b16 %v1014
    %v1488 = vunpack.c.l.b16 %v1015
    %v1489 = vunpack.c.h.b16 %v1015
    %v1490 = vunpack.c.l.b16 %v1016
    %v1491 = vunpack.c.l.b16 %v1017
    %v1492 = vunpack.c.h.b16 %v1017
    %v1493 = vunpack.c.l.b16 %v1018
    %v1494 = vunpack.c.l.b16 %v1019
    %v1495 = vunpack.c.h.b16 %v1019
    %v1496 = vunpack.c.l.b16 %v1020
    %v1497 = vunpack.c.l.b16 %v1021
    %v1498 = vunpack.c.h.b16 %v1021
    %v1499 = vunpack.c.l.b16 %v1022
    %v1500 = vunpack.c.l.b16 %v1023
    %v1501 = vunpack.c.h.b16 %v1023
    %v1502 = vunpack.c.l.b16 %v1024
    %v1503 = vunpack.c.l.b16 %v1025
    %v1504 = vunpack.c.h.b16 %v1025
    %v1505 = vunpack.c.l.b16 %v1026
    %v1506 = vunpack.c.l.b16 %v1027
    %v1507 = vunpack.c.h.b16 %v1027
    %v1508 = vunpack.c.l.b16 %v1028
    %v1509 = vunpack.c.l.b16 %v1029
    %v1510 = vunpack.c.h.b16 %v1029
    %v1511 = vunpack.c.l.b16 %v1030
    %v1512 = vunpack.c.l.b16 %v1031
    %v1513 = vunpack.c.h.b16 %v1031
    %v1514 = vunpack.c.l.b16 %v1032
    %v1515 = vunpack.c.l.b16 %v1033
    %v1516 = vunpack.c.h.b16 %v1033
    %v1517 = vunpack.c.l.b16 %v1034
    %v1518 = vunpack.c.l.b16 %v1035
    %v1519 = vunpack.c.h.b16 %v1035
    %v1520 = vunpack.c.l.b16 %v1036
    %v1521 = vunpack.c.l.b16 %v1037
    %v1522 = vunpack.c.h.b16 %v1037
    %v1523 = vunpack.c.l.b16 %v1038
    %v1524 = vunpack.c.l.b16 %v1039
    %v1525 = vunpack.c.h.b16 %v1039
    %v1526 = vunpack.c.l.b16 %v1040
    %v1527 = vunpack.c.l.b16 %v1041
    %v1528 = vunpack.c.h.b16 %v1041
    %v1529 = vunpack.c.l.b16 %v1042
    %v1530 = vunpack.c.l.b16 %v1043
    %v1531 = vunpack.c.h.b16 %v1043
    %v1532 = vunpack.c.l.b16 %v1044
    %v1533 = vpack.c.b16 %v1248, %v1245
    %v1534 = vpack.c.b16 %v1249, %v1246
    %v1535 = vpack.c.b16 %v1250, %v1247
    %v1536 = vpack.c.b16 %v1254, %v1251
    %v1537 = vpack.c.b16 %v1255, %v1252
    %v1538 = vpack.c.b16 %v1256, %v1253
    %v1539 = vpack.c.b16 %v1260, %v1257
    %v1540 = vpack.c.b16 %v1261, %v1258
    %v1541 = vpack.c.b16 %v1262, %v1259
    %v1542 = vpack.c.b16 %v1266, %v1263
    %v1543 = vpack.c.b16 %v1267, %v1264
    %v1544 = vpack.c.b16 %v1268, %v1265
    %v1545 = vpack.c.b16 %v1272, %v1269
    %v1546 = vpack.c.b16 %v1273, %v1270
    %v1547 = vpack.c.b16 %v1274, %v1271
    %v1548 = vpack.c.b16 %v1278, %v1275
    %v1549 = vpack.c.b16 %v1279, %v1276
    %v1550 = vpack.c.b16 %v1280, %v1277
    %v1551 = vpack.c.b16 %v1284, %v1281
    %v1552 = vpack.c.b16 %v1285, %v1282
    %v1553 = vpack.c.b16 %v1286, %v1283
    %v1554 = vpack.c.b16 %v1290, %v1287
    %v1555 = vpack.c.b16 %v1291, %v1288
    %v1556 = vpack.c.b16 %v1292, %v1289
    %v1557 = vpack.c.b16 %v1296, %v1293
    %v1558 = vpack.c.b16 %v1297, %v1294
    %v1559 = vpack.c.b16 %v1298, %v1295
    %v1560 = vpack.c.b16 %v1302, %v1299
    %v1561 = vpack.c.b16 %v1303, %v1300
    %v1562 = vpack.c.b16 %v1304, %v1301
    %v1563 = vpack.c.b16 %v1308, %v1305
    %v1564 = vpack.c.b16 %v1309, %v1306
    %v1565 = vpack.c.b16 %v1310, %v1307
    %v1566 = vpack.c.b16 %v1314, %v1311
    %v1567 = vpack.c.b16 %v1315, %v1312
    %v1568 = vpack.c.b16 %v1316, %v1313
    %v1569 = vpack.c.b16 %v1320, %v1317
    %v1570 = vpack.c.b16 %v1321, %v1318
    %v1571 = vpack.c.b16 %v1322, %v1319
    %v1572 = vpack.c.b16 %v1326, %v1323
    %v1573 = vpack.c.b16 %v1327, %v1324
    %v1574 = vpack.c.b16 %v1328, %v1325
    %v1575 = vpack.c.b16 %v1332, %v1329
    %v1576 = vpack.c.b16 %v1333, %v1330
    %v1577 = vpack.c.b16 %v1334, %v1331
    %v1578 = vpack.c.b16 %v1338, %v1335
    %v1579 = vpack.c.b16 %v1339, %v1336
    %v1580 = vpack.c.b16 %v1340, %v1337
    %v1581 = vpack.c.b16 %v1344, %v1341
    %v1582 = vpack.c.b16 %v1345, %v1342
    %v1583 = vpack.c.b16 %v1346, %v1343
    %v1584 = vpack.c.b16 %v1350, %v1347
    %v1585 = vpack.c.b16 %v1351, %v1348
    %v1586 = vpack.c.b16 %v1352, %v1349
    %v1587 = vpack.c.b16 %v1356, %v1353
    %v1588 = vpack.c.b16 %v1357, %v1354
    %v1589 = vpack.c.b16 %v1358, %v1355
    %v1590 = vpack.c.b16 %v1362, %v1359
    %v1591 = vpack.c.b16 %v1363, %v1360
    %v1592 = vpack.c.b16 %v1364, %v1361
    %v1593 = vpack.c.b16 %v1368, %v1365
    %v1594 = vpack.c.b16 %v1369, %v1366
    %v1595 = vpack.c.b16 %v1370, %v1367
    %v1596 = vpack.c.b16 %v1374, %v1371
    %v1597 = vpack.c.b16 %v1375, %v1372
    %v1598 = vpack.c.b16 %v1376, %v1373
    %v1599 = vpack.c.b16 %v1380, %v1377
    %v1600 = vpack.c.b16 %v1381, %v1378
    %v1601 = vpack.c.b16 %v1382, %v1379
    %v1602 = vpack.c.b16 %v1386, %v1383
    %v1603 = vpack.c.b16 %v1387, %v1384
    %v1604 = vpack.c.b16 %v1388, %v1385
    %v1605 = vpack.c.b16 %v1392, %v1389
    %v1606 = vpack.c.b16 %v1393, %v1390
    %v1607 = vpack.c.b16 %v1394, %v1391
    %v1608 = vpack.c.b16 %v1398, %v1395
    %v1609 = vpack.c.b16 %v1399, %v1396
    %v1610 = vpack.c.b16 %v1400, %v1397
    %v1611 = vpack.c.b16 %v1404, %v1401
    %v1612 = vpack.c.b16 %v1405, %v1402
    %v1613 = vpack.c.b16 %v1406, %v1403
    %v1614 = vpack.c.b16 %v1410, %v1407
    %v1615 = vpack.c.b16 %v1411, %v1408
    %v1616 = vpack.c.b16 %v1412, %v1409
    %v1617 = vpack.c.b16 %v1416, %v1413
    %v1618 = vpack.c.b16 %v1417, %v1414
    %v1619 = vpack.c.b16 %v1418, %v1415
    %v1620 = vpack.c.b16 %v1422, %v1419
    %v1621 = vpack.c.b16 %v1423, %v1420
    %v1622 = vpack.c.b16 %v1424, %v1421
    %v1623 = vpack.c.b16 %v1428, %v1425
    %v1624 = vpack.c.b16 %v1429, %v1426
    %v1625 = vpack.c.b16 %v1430, %v1427
    %v1626 = vpack.c.b16 %v1434, %v1431
    %v1627 = vpack.c.b16 %v1435, %v1432
    %v1628 = vpack.c.b16 %v1436, %v1433
    %v1629 = vpack.c.b16 %v1440, %v1437
    %v1630 = vpack.c.b16 %v1441, %v1438
    %v1631 = vpack.c.b16 %v1442, %v1439
    %v1632 = vpack.c.b16 %v1446, %v1443
    %v1633 = vpack.c.b16 %v1447, %v1444
    %v1634 = vpack.c.b16 %v1448, %v1445
    %v1635 = vpack.c.b16 %v1452, %v1449
    %v1636 = vpack.c.b16 %v1453, %v1450
    %v1637 = vpack.c.b16 %v1454, %v1451
    %v1638 = vpack.c.b16 %v1458, %v1455
    %v1639 = vpack.c.b16 %v1459, %v1456
    %v1640 = vpack.c.b16 %v1460, %v1457
    %v1641 = vpack.c.b16 %v1464, %v1461
    %v1642 = vpack.c.b16 %v1465, %v1462
    %v1643 = vpack.c.b16 %v1466, %v1463
    %v1644 = vpack.c.b16 %v1470, %v1467
    %v1645 = vpack.c.b16 %v1471, %v1468
    %v1646 = vpack.c.b16 %v1472, %v1469
    %v1647 = vpack.c.b16 %v1476, %v1473
    %v1648 = vpack.c.b16 %v1477, %v1474
    %v1649 = vpack.c.b16 %v1478, %v1475
    %v1650 = vpack.c.b16 %v1482, %v1479
    %v1651 = vpack.c.b16 %v1483, %v1480
    %v1652 = vpack.c.b16 %v1484, %v1481
    %v1653 = vpack.c.b16 %v1488, %v1485
    %v1654 = vpack.c.b16 %v1489, %v1486
    %v1655 = vpack.c.b16 %v1490, %v1487
    %v1656 = vpack.c.b16 %v1494, %v1491
    %v1657 = vpack.c.b16 %v1495, %v1492
    %v1658 = vpack.c.b16 %v1496, %v1493
    %v1659 = vpack.c.b16 %v1500, %v1497
    %v1660 = vpack.c.b16 %v1501, %v1498
    %v1661 = vpack.c.b16 %v1502, %v1499
    %v1662 = vpack.c.b16 %v1506, %v1503
    %v1663 = vpack.c.b16 %v1507, %v1504
    %v1664 = vpack.c.b16 %v1508, %v1505
    %v1665 = vpack.c.b16 %v1512, %v1509
    %v1666 = vpack.c.b16 %v1513, %v1510
    %v1667 = vpack.c.b16 %v1514, %v1511
    %v1668 = vpack.c.b16 %v1518, %v1515
    %v1669 = vpack.c.b16 %v1519, %v1516
    %v1670 = vpack.c.b16 %v1520, %v1517
    %v1671 = vpack.c.b16 %v1524, %v1521
    %v1672 = vpack.c.b16 %v1525, %v1522
    %v1673 = vpack.c.b16 %v1526, %v1523
    %v1674 = vpack.c.b16 %v1530, %v1527
    %v1675 = vpack.c.b16 %v1531, %v1528
    %v1676 = vpack.c.b16 %v1532, %v1529
    %1821 = vmatpush.bf16.msra.mxu0 %v1554
    %1822 = vmatpush.bf16.msra.mxu0 %v1551
    %1823 = vmatpush.bf16.msra.mxu0 %v1548
    %1824 = vmatpush.bf16.msra.mxu0 %v1545
    %1825 = vmatpush.bf16.msra.mxu0 %v1542
    %1826 = vmatpush.bf16.msra.mxu0 %v1539
    %1827 = vmatpush.bf16.msra.mxu0 %v1536
    %1828 = vmatpush.bf16.msra.mxu0 %v1533
    %1829 = vmatmul.bf16.gmra.mxu0 %v847
    %v1830 = vpop.f32.mrf.mxu0
    %v1831 = vadd.f32 %v1047, %v1830
    %v1832 = vpop.f32.mrf.mxu0
    %1833 = vdwg.mxu0
    %1834 = vmatpush.bf16.msra.mxu0 %v1578
    %1835 = vmatpush.bf16.msra.mxu0 %v1575
    %1836 = vmatpush.bf16.msra.mxu0 %v1572
    %1837 = vmatpush.bf16.msra.mxu0 %v1569
    %1838 = vmatpush.bf16.msra.mxu0 %v1566
    %1839 = vmatpush.bf16.msra.mxu0 %v1563
    %1840 = vmatpush.bf16.msra.mxu0 %v1560
    %1841 = vmatpush.bf16.msra.mxu0 %v1557
    %1842 = vmatmul.bf16.gmra.mxu0 %v848
    %v1843 = vpop.f32.mrf.mxu0
    %v1844 = vadd.f32 %v1831, %v1843
    %v1845 = vpop.f32.mrf.mxu0
    %1846 = vdwg.mxu0
    %1847 = vmatpush.bf16.msra.mxu0 %v1602
    %1848 = vmatpush.bf16.msra.mxu0 %v1599
    %1849 = vmatpush.bf16.msra.mxu0 %v1596
    %1850 = vmatpush.bf16.msra.mxu0 %v1593
    %1851 = vmatpush.bf16.msra.mxu0 %v1590
    %1852 = vmatpush.bf16.msra.mxu0 %v1587
    %1853 = vmatpush.bf16.msra.mxu0 %v1584
    %1854 = vmatpush.bf16.msra.mxu0 %v1581
    %1855 = vmatmul.bf16.gmra.mxu0 %v849
    %v1856 = vpop.f32.mrf.mxu0
    %v1857 = vadd.f32 %v1844, %v1856
    %v1858 = vpop.f32.mrf.mxu0
    %1859 = vdwg.mxu0
    %1860 = vmatpush.bf16.msra.mxu0 %v1626
    %1861 = vmatpush.bf16.msra.mxu0 %v1623
    %1862 = vmatpush.bf16.msra.mxu0 %v1620
    %1863 = vmatpush.bf16.msra.mxu0 %v1617
    %1864 = vmatpush.bf16.msra.mxu0 %v1614
    %1865 = vmatpush.bf16.msra.mxu0 %v1611
    %1866 = vmatpush.bf16.msra.mxu0 %v1608
    %1867 = vmatpush.bf16.msra.mxu0 %v1605
    %1868 = vmatmul.bf16.gmra.mxu0 %v850
    %v1869 = vpop.f32.mrf.mxu0
    %v1870 = vadd.f32 %v1857, %v1869
    %v1871 = vpop.f32.mrf.mxu0
    %1872 = vdwg.mxu0
    %1873 = vmatpush.bf16.msra.mxu0 %v1650
    %1874 = vmatpush.bf16.msra.mxu0 %v1647
    %1875 = vmatpush.bf16.msra.mxu0 %v1644
    %1876 = vmatpush.bf16.msra.mxu0 %v1641
    %1877 = vmatpush.bf16.msra.mxu0 %v1638
    %1878 = vmatpush.bf16.msra.mxu0 %v1635
    %1879 = vmatpush.bf16.msra.mxu0 %v1632
    %1880 = vmatpush.bf16.msra.mxu0 %v1629
    %1881 = vmatmul.bf16.gmra.mxu0 %v851
    %v1882 = vpop.f32.mrf.mxu0
    %v1883 = vadd.f32 %v1870, %v1882
    %v1884 = vpop.f32.mrf.mxu0
    %1885 = vdwg.mxu0
    %1886 = vmatpush.bf16.msra.mxu0 %v1674
    %1887 = vmatpush.bf16.msra.mxu0 %v1671
    %1888 = vmatpush.bf16.msra.mxu0 %v1668
    %1889 = vmatpush.bf16.msra.mxu0 %v1665
    %1890 = vmatpush.bf16.msra.mxu0 %v1662
    %1891 = vmatpush.bf16.msra.mxu0 %v1659
    %1892 = vmatpush.bf16.msra.mxu0 %v1656
    %1893 = vmatpush.bf16.msra.mxu0 %v1653
    %1894 = vmatmul.bf16.gmra.mxu0 %v852
    %v1895 = vpop.f32.mrf.mxu0
    %v1896 = vadd.f32 %v1883, %v1895
    %v1897 = vpop.f32.mrf.mxu0
    %1898 = vdwg.mxu0
    %1899 = vmatpush.bf16.msra.mxu0 %v1555
    %1900 = vmatpush.bf16.msra.mxu0 %v1552
    %1901 = vmatpush.bf16.msra.mxu0 %v1549
    %1902 = vmatpush.bf16.msra.mxu0 %v1546
    %1903 = vmatpush.bf16.msra.mxu0 %v1543
    %1904 = vmatpush.bf16.msra.mxu0 %v1540
    %1905 = vmatpush.bf16.msra.mxu0 %v1537
    %1906 = vmatpush.bf16.msra.mxu0 %v1534
    %1907 = vmatmul.bf16.gmra.mxu0 %v847
    %v1908 = vpop.f32.mrf.mxu0
    %v1909 = vadd.f32 %v1048, %v1908
    %v1910 = vpop.f32.mrf.mxu0
    %1911 = vdwg.mxu0
    %1912 = vmatpush.bf16.msra.mxu0 %v1579
    %1913 = vmatpush.bf16.msra.mxu0 %v1576
    %1914 = vmatpush.bf16.msra.mxu0 %v1573
    %1915 = vmatpush.bf16.msra.mxu0 %v1570
    %1916 = vmatpush.bf16.msra.mxu0 %v1567
    %1917 = vmatpush.bf16.msra.mxu0 %v1564
    %1918 = vmatpush.bf16.msra.mxu0 %v1561
    %1919 = vmatpush.bf16.msra.mxu0 %v1558
    %1920 = vmatmul.bf16.gmra.mxu0 %v848
    %v1921 = vpop.f32.mrf.mxu0
    %v1922 = vadd.f32 %v1909, %v1921
    %v1923 = vpop.f32.mrf.mxu0
    %1924 = vdwg.mxu0
    %1925 = vmatpush.bf16.msra.mxu0 %v1603
    %1926 = vmatpush.bf16.msra.mxu0 %v1600
    %1927 = vmatpush.bf16.msra.mxu0 %v1597
    %1928 = vmatpush.bf16.msra.mxu0 %v1594
    %1929 = vmatpush.bf16.msra.mxu0 %v1591
    %1930 = vmatpush.bf16.msra.mxu0 %v1588
    %1931 = vmatpush.bf16.msra.mxu0 %v1585
    %1932 = vmatpush.bf16.msra.mxu0 %v1582
    %1933 = vmatmul.bf16.gmra.mxu0 %v849
    %v1934 = vpop.f32.mrf.mxu0
    %v1935 = vadd.f32 %v1922, %v1934
    %v1936 = vpop.f32.mrf.mxu0
    %1937 = vdwg.mxu0
    %1938 = vmatpush.bf16.msra.mxu0 %v1627
    %1939 = vmatpush.bf16.msra.mxu0 %v1624
    %1940 = vmatpush.bf16.msra.mxu0 %v1621
    %1941 = vmatpush.bf16.msra.mxu0 %v1618
    %1942 = vmatpush.bf16.msra.mxu0 %v1615
    %1943 = vmatpush.bf16.msra.mxu0 %v1612
    %1944 = vmatpush.bf16.msra.mxu0 %v1609
    %1945 = vmatpush.bf16.msra.mxu0 %v1606
    %1946 = vmatmul.bf16.gmra.mxu0 %v850
    %v1947 = vpop.f32.mrf.mxu0
    %v1948 = vadd.f32 %v1935, %v1947
    %v1949 = vpop.f32.mrf.mxu0
    %1950 = vdwg.mxu0
    %1951 = vmatpush.bf16.msra.mxu0 %v1651
    %1952 = vmatpush.bf16.msra.mxu0 %v1648
    %1953 = vmatpush.bf16.msra.mxu0 %v1645
    %1954 = vmatpush.bf16.msra.mxu0 %v1642
    %1955 = vmatpush.bf16.msra.mxu0 %v1639
    %1956 = vmatpush.bf16.msra.mxu0 %v1636
    %1957 = vmatpush.bf16.msra.mxu0 %v1633
    %1958 = vmatpush.bf16.msra.mxu0 %v1630
    %1959 = vmatmul.bf16.gmra.mxu0 %v851
    %v1960 = vpop.f32.mrf.mxu0
    %v1961 = vadd.f32 %v1948, %v1960
    %v1962 = vpop.f32.mrf.mxu0
    %1963 = vdwg.mxu0
    %1964 = vmatpush.bf16.msra.mxu0 %v1675
    %1965 = vmatpush.bf16.msra.mxu0 %v1672
    %1966 = vmatpush.bf16.msra.mxu0 %v1669
    %1967 = vmatpush.bf16.msra.mxu0 %v1666
    %1968 = vmatpush.bf16.msra.mxu0 %v1663
    %1969 = vmatpush.bf16.msra.mxu0 %v1660
    %1970 = vmatpush.bf16.msra.mxu0 %v1657
    %1971 = vmatpush.bf16.msra.mxu0 %v1654
    %1972 = vmatmul.bf16.gmra.mxu0 %v852
    %v1973 = vpop.f32.mrf.mxu0
    %v1974 = vadd.f32 %v1961, %v1973
    %v1975 = vpop.f32.mrf.mxu0
    %1976 = vdwg.mxu0
    %1977 = vmatpush.bf16.msra.mxu0 %v1556
    %1978 = vmatpush.bf16.msra.mxu0 %v1553
    %1979 = vmatpush.bf16.msra.mxu0 %v1550
    %1980 = vmatpush.bf16.msra.mxu0 %v1547
    %1981 = vmatpush.bf16.msra.mxu0 %v1544
    %1982 = vmatpush.bf16.msra.mxu0 %v1541
    %1983 = vmatpush.bf16.msra.mxu0 %v1538
    %1984 = vmatpush.bf16.msra.mxu0 %v1535
    %1985 = vmatmul.bf16.gmra.mxu0 %v847
    %v1986 = vpop.f32.mrf.mxu0
    %v1987 = vadd.f32 %v1049, %v1986
    %v1988 = vpop.f32.mrf.mxu0
    %1989 = vdwg.mxu0
    %1990 = vmatpush.bf16.msra.mxu0 %v1580
    %1991 = vmatpush.bf16.msra.mxu0 %v1577
    %1992 = vmatpush.bf16.msra.mxu0 %v1574
    %1993 = vmatpush.bf16.msra.mxu0 %v1571
    %1994 = vmatpush.bf16.msra.mxu0 %v1568
    %1995 = vmatpush.bf16.msra.mxu0 %v1565
    %1996 = vmatpush.bf16.msra.mxu0 %v1562
    %1997 = vmatpush.bf16.msra.mxu0 %v1559
    %1998 = vmatmul.bf16.gmra.mxu0 %v848
    %v1999 = vpop.f32.mrf.mxu0
    %v2000 = vadd.f32 %v1987, %v1999
    %v2001 = vpop.f32.mrf.mxu0
    %2002 = vdwg.mxu0
    %2003 = vmatpush.bf16.msra.mxu0 %v1604
    %2004 = vmatpush.bf16.msra.mxu0 %v1601
    %2005 = vmatpush.bf16.msra.mxu0 %v1598
    %2006 = vmatpush.bf16.msra.mxu0 %v1595
    %2007 = vmatpush.bf16.msra.mxu0 %v1592
    %2008 = vmatpush.bf16.msra.mxu0 %v1589
    %2009 = vmatpush.bf16.msra.mxu0 %v1586
    %2010 = vmatpush.bf16.msra.mxu0 %v1583
    %2011 = vmatmul.bf16.gmra.mxu0 %v849
    %v2012 = vpop.f32.mrf.mxu0
    %v2013 = vadd.f32 %v2000, %v2012
    %v2014 = vpop.f32.mrf.mxu0
    %2015 = vdwg.mxu0
    %2016 = vmatpush.bf16.msra.mxu0 %v1628
    %2017 = vmatpush.bf16.msra.mxu0 %v1625
    %2018 = vmatpush.bf16.msra.mxu0 %v1622
    %2019 = vmatpush.bf16.msra.mxu0 %v1619
    %2020 = vmatpush.bf16.msra.mxu0 %v1616
    %2021 = vmatpush.bf16.msra.mxu0 %v1613
    %2022 = vmatpush.bf16.msra.mxu0 %v1610
    %2023 = vmatpush.bf16.msra.mxu0 %v1607
    %2024 = vmatmul.bf16.gmra.mxu0 %v850
    %v2025 = vpop.f32.mrf.mxu0
    %v2026 = vadd.f32 %v2013, %v2025
    %v2027 = vpop.f32.mrf.mxu0
    %2028 = vdwg.mxu0
    %2029 = vmatpush.bf16.msra.mxu0 %v1652
    %2030 = vmatpush.bf16.msra.mxu0 %v1649
    %2031 = vmatpush.bf16.msra.mxu0 %v1646
    %2032 = vmatpush.bf16.msra.mxu0 %v1643
    %2033 = vmatpush.bf16.msra.mxu0 %v1640
    %2034 = vmatpush.bf16.msra.mxu0 %v1637
    %2035 = vmatpush.bf16.msra.mxu0 %v1634
    %2036 = vmatpush.bf16.msra.mxu0 %v1631
    %2037 = vmatmul.bf16.gmra.mxu0 %v851
    %v2038 = vpop.f32.mrf.mxu0
    %v2039 = vadd.f32 %v2026, %v2038
    %v2040 = vpop.f32.mrf.mxu0
    %2041 = vdwg.mxu0
    %2042 = vmatpush.bf16.msra.mxu0 %v1676
    %2043 = vmatpush.bf16.msra.mxu0 %v1673
    %2044 = vmatpush.bf16.msra.mxu0 %v1670
    %2045 = vmatpush.bf16.msra.mxu0 %v1667
    %2046 = vmatpush.bf16.msra.mxu0 %v1664
    %2047 = vmatpush.bf16.msra.mxu0 %v1661
    %2048 = vmatpush.bf16.msra.mxu0 %v1658
    %2049 = vmatpush.bf16.msra.mxu0 %v1655
    %2050 = vmatmul.bf16.gmra.mxu0 %v852
    %v2051 = vpop.f32.mrf.mxu0
    %v2052 = vadd.f32 %v2039, %v2051
    %v2053 = vpop.f32.mrf.mxu0
    %2054 = vdwg.mxu0
    %v2055 = vmax.f32 %v1896, 0.0
    %v2056 = vmax.f32 %v1974, 0.0
    %v2057 = vmax.f32 %v2052, 0.0
    %v2058 = vld [vmem:[%s5] sm:$0x7]
    %v2060 = vperm.slane %v2058, 0
    %v2061 = vperm.slane %v2058, 1
    %v2062 = vperm.slane %v2058, 2
    %v2066 = vmul.f32 %v2055, %v2060
    %v2067 = vmul.f32 %v2056, %v2061
    %v2068 = vmul.f32 %v2057, %v2062
    %v2069 = vadd.f32 %v2066, %v2067
    %v2070 = vadd.f32 %v2069, %v2068
    %2071 = vadd.xlane.f32.xlu0 %v2070
    %v2072 = vpop.xlane.xlu0 %2071
    %v2073 = vld [vmem:[#allocation2] sm:$0x1]
    %v2075 = vperm.slane %v2073, 0
    %v2077 = vadd.f32 %v2072, %v2075
    %v2078 = vxor.u32 %v2077, 2147483648
    %v2079 = vmul.f32 %v2078, 1.442695
    %v2080 = vpow.pop %v2079
    %v2081 = vadd.f32 %v2080, 1.0
    %v2082 = vrcp.pop %v2081
    %v2083 = vmul.f32 %v2081, %v2082
    %v2084 = vsub.f32 1.0, %v2083
    %v2085 = vmul.f32 %v2082, %v2084
    %v2086 = vadd.f32 %v2082, %v2085
    %vm2087 = vweird.f32 %v2081
    %vm2088 = vweird.f32 %v2082
    %vm2089 = vmor %vm2087, %vm2088
    %v2090 = vsel %vm2089, %v2082, %v2086
    %v2091 = vand.u32 2147483647, %v2081
    %vm2092 = vcmp.eq.f32.partialorder %v2091, 8.507059e+37
    %v2093 = vand.u32 %v2081, 2147483648
    %v2094 = vor.u32 1.1754944e-38, %v2093
    %v2095 = vsel %vm2092, %v2094, %v2090
    %v2096 = vmul.f32 1.0, %v2095
    %vm2097 = vcmask 7168
    %2098 = vst.msk [vmem:[%s7] sm:$0xff] %vm2097, %v2096
    // Predicated region
    $region46: #{tpu_custom_call.1} parent=1 // pred_check
      _
    $region47: #{tpu_custom_call.1} parent=1 // pred_check_branch
      %2100 = sbr.rel (0) target = $region49
    $region48: #{tpu_custom_call.1} parent=1 // pred_region
      _
    $region49: #{tpu_custom_call.1} parent=1 // pred_fallthru
      _
    // Predicated region
    $region50: #{tpu_custom_call.1} parent=1 // pred_check
      _
    $region51: #{tpu_custom_call.1} parent=1 // pred_check_branch
      %2102 = sbr.rel (0) target = $region53
    $region52: #{tpu_custom_call.1} parent=1 // pred_region
      _
    $region53: #{tpu_custom_call.1} parent=1 // pred_fallthru
      _
    %2103 = vsyncpa [#allocation4], 1
    %2104 = vsyncpa [#allocation6], 1
    %2105 = vsyncpa [#allocation9], 1

</llo_original>
